<compile_context>
chip_gen: v7x
topology: tpu7x:2x2x1
jax: 0.10.0
libtpu: 0.0.40
codegen_flags: <defaults>
</compile_context>

<pallas_src>
import numpy as np
import jax
import jax.numpy as jnp
from jax.experimental import pallas as pl
from jax.experimental.pallas import tpu as pltpu

# ----- dimensions (planes=2048 scaled by 1/16) -----
N, C, H, W = 2, 128, 16, 16
HW = H * W


def adaptive_bins(size, out):
    """PyTorch AdaptiveAvgPool2d bin boundaries: [floor(i*size/out), ceil((i+1)*size/out))."""
    return [(int(np.floor(i * size / out)), int(np.ceil((i + 1) * size / out)))
            for i in range(out)]


def build_pool_matrix_T():
    """Static (HW, 9) matrix PT such that x(C,HW) @ PT == AdaptiveAvgPool2d((3,3)), flattened k=i*3+j."""
    hb = adaptive_bins(H, 3)
    wb = adaptive_bins(W, 3)
    P = np.zeros((9, HW), np.float32)
    for i, (h0, h1) in enumerate(hb):
        for j, (w0, w1) in enumerate(wb):
            k = i * 3 + j
            val = 1.0 / float((h1 - h0) * (w1 - w0))
            for h in range(h0, h1):
                for w in range(w0, w1):
                    P[k, h * W + w] = val
    return P.T  # (HW, 9)


_POOL_T_NP = build_pool_matrix_T()   # module-level constant; folded under jit


def _tensorcores_per_chip():
    try:
        kind = jax.devices()[0].device_kind.lower()
        if "v7" in kind or "7x" in kind:
            return 2
    except Exception:
        pass
    return 1


# ----------------------------- Pallas kernel ---------------------------------
def attn_kernel(x_ref, poolT_ref, cw_ref, fcpsi_ref, o_ref):
    poolT = poolT_ref[...]                        # (HW, 9)   adaptive-pool matrix (transposed)
    cw = cw_ref[...]                              # (C, 11)   packed small weights
    dww = cw[:, 0:9]                              # depthwise 3x3 weights, [c, i*3+j]
    dwb = cw[:, 9:10]                             # depthwise bias         (C, 1)
    fcb = cw[:, 10:11]                            # 1x1-conv bias          (C, 1)
    c = fcpsi_ref.shape[1]                        # == C
    fcw = fcpsi_ref[0:c, :]                       # 1x1 conv weight, out-major (C, C)
    psi = fcpsi_ref[c:c + 1, :]                   # psi 1x1 weight as lane-dense row (1, C)

    for b in range(x_ref.shape[0]):               # unrolled at trace time (1 on v7x, N on v5e/v6e)
        x = x_ref[b]                              # (C, HW) f32, channels on sublanes

        # --- channel attention (ca_subAvgpool) ---
        # AdaptiveAvgPool2d((3,3)) as one MXU matmul: (C, HW) @ (HW, 9) -> (C, 9)
        pooled = jnp.dot(x, poolT, preferred_element_type=jnp.float32)
        # depthwise 3x3 conv (groups=C, valid on the 3x3 map) + bias + ReLU -> (C, 1)
        dw = jnp.sum(pooled * dww, axis=1, keepdims=True) + dwb
        dw = jnp.maximum(dw, 0.0)
        # 1x1 conv (C -> C) + bias, Sigmoid -> (C, 1) column (broadcasts along lanes)
        ca_logit = jnp.dot(fcw, dw, preferred_element_type=jnp.float32) + fcb
        ca = 1.0 / (1.0 + jnp.exp(-ca_logit))

        # --- spatial attention (psi): 1x1 conv C -> 1, no bias, Sigmoid ---
        # lane-dense (1, HW) row (broadcasts along sublanes)
        sa_logit = jnp.dot(psi, x, preferred_element_type=jnp.float32)
        sa = 1.0 / (1.0 + jnp.exp(-sa_logit))

        # --- residual combine, fused: x + x*ca + x*sa == x * (1 + ca + sa) ---
        o_ref[b] = x * (1.0 + ca + sa)            # lane-dense (C, HW=256) unmasked store


# ------------------------------- parameters ----------------------------------
def init_params(key):
    ks = jax.random.split(key, 5)
    # depthwise 3x3 conv weights: [c, i*3+j] == torch weight[c, 0, i, j]
    dw_w = jax.random.normal(ks[0], (C, 9), jnp.float32) / 3.0
    dw_b = 0.1 * jax.random.normal(ks[1], (C,), jnp.float32)
    # 1x1 conv (C -> C), out-major: [c_out, c_in] (torch conv weight[:, :, 0, 0])
    fc_w = jax.random.normal(ks[2], (C, C), jnp.float32) / np.sqrt(C)
    fc_b = 0.1 * jax.random.normal(ks[3], (C,), jnp.float32)
    # psi: 1x1 conv (C -> 1), bias=False: [c_in]
    psi_w = jax.random.normal(ks[4], (C,), jnp.float32) / np.sqrt(C)
    return dict(dw_w=dw_w, dw_b=dw_b, fc_w=fc_w, fc_b=fc_b, psi_w=psi_w)


def pack_params(p):
    """Pack small weights once (outside the per-call path)."""
    cw = jnp.concatenate([p["dw_w"],
                          p["dw_b"][:, None],
                          p["fc_b"][:, None]], axis=1)          # (C, 11)
    fcpsi = jnp.concatenate([p["fc_w"], p["psi_w"][None, :]], axis=0)   # (C+1, C)
    return cw, fcpsi


# --------------------------------- wrapper ------------------------------------
def _make_pallas_fn(num_cores):
    # 2 TCs (v7x): one batch element per core.  1 TC (v5e/v6e): single grid step, full batch block.
    grid_n = num_cores if (num_cores > 1 and N % num_cores == 0) else 1
    bn = N // grid_n
    grid_spec = pltpu.PrefetchScalarGridSpec(
        num_scalar_prefetch=0,
        grid=(grid_n,),
        in_specs=[
            pl.BlockSpec((bn, C, HW), lambda n: (n, 0, 0)),
            pl.BlockSpec((HW, 9), lambda n: (0, 0)),
            pl.BlockSpec((C, 11), lambda n: (0, 0)),
            pl.BlockSpec((C + 1, C), lambda n: (0, 0)),
        ],
        out_specs=pl.BlockSpec((bn, C, HW), lambda n: (n, 0, 0)),
    )
    return pl.pallas_call(
        attn_kernel,
        out_shape=jax.ShapeDtypeStruct((N, C, HW), jnp.float32),
        grid_spec=grid_spec,
        compiler_params=pltpu.CompilerParams(dimension_semantics=("parallel",)),
    )


_PALLAS_FN = _make_pallas_fn(_tensorcores_per_chip())


@jax.jit
def attention_forward(x_nchw, cw, fcpsi):
    # NCHW consumed directly: metadata-only reshape, no transposes.
    xf = x_nchw.reshape(N, C, HW).astype(jnp.float32)
    poolT = jnp.asarray(_POOL_T_NP)                     # compile-time constant under jit
    out = _PALLAS_FN(xf, poolT, cw, fcpsi)
    return out.reshape(N, C, H, W)                      # metadata-only, stays NCHW


# ------------------------------ pure-JAX reference ----------------------------
def reference_forward(x_nchw, p):
    hp = jax.lax.Precision.HIGHEST
    x = x_nchw.astype(jnp.float32)                      # (N, C, H, W)

    hb = adaptive_bins(H, 3)
    wb = adaptive_bins(W, 3)
    pooled = jnp.stack([
        jnp.stack([jnp.mean(x[:, :, h0:h1, w0:w1], axis=(2, 3)) for (w0, w1) in wb], axis=2)
        for (h0, h1) in hb], axis=2)                    # (N, C, 3, 3)
    pooled = pooled.reshape(N, C, 9)

    # depthwise 3x3 conv (groups=C, valid) + bias + ReLU
    y = jnp.einsum("nck,ck->nc", pooled, p["dw_w"], precision=hp) + p["dw_b"]
    y = jnp.maximum(y, 0.0)
    # 1x1 conv C->C + bias, sigmoid
    ca = jax.nn.sigmoid(jnp.einsum("oc,nc->no", p["fc_w"], y, precision=hp) + p["fc_b"])  # (N, C)
    # psi: 1x1 conv C->1, no bias, sigmoid
    sa = jax.nn.sigmoid(jnp.einsum("nchw,c->nhw", x, p["psi_w"], precision=hp))           # (N, H, W)

    return x + x * ca[:, :, None, None] + x * sa[:, None, :, :]


# ----------------------------------- main -------------------------------------
if __name__ == "__main__":
    key = jax.random.PRNGKey(0)
    kx, kp = jax.random.split(key)
    x = jax.random.normal(kx, (N, C, H, W), jnp.float32)        # NCHW, like PyTorch
    params = init_params(kp)
    cw, fcpsi = pack_params(params)

    out = jax.block_until_ready(attention_forward(x, cw, fcpsi))
    ref = jax.block_until_ready(reference_forward(x, params))

    np.testing.assert_allclose(np.asarray(out), np.asarray(ref), rtol=1e-4, atol=1e-4)
    assert out.shape == (N, C, H, W)

    print("KERNEL_OK")
</pallas_src>

<mosaic_0001>
module attributes {stable_mosaic.version = 11 : i64} {
  func.func @attn_kernel(%arg0: i32, %arg1: memref<2x128x256xf32, #tpu.memory_space<vmem>>, %arg2: memref<256x9xf32, #tpu.memory_space<vmem>>, %arg3: memref<128x11xf32, #tpu.memory_space<vmem>>, %arg4: memref<129x128xf32, #tpu.memory_space<vmem>>, %arg5: memref<2x128x256xf32, #tpu.memory_space<vmem>>) attributes {dimension_semantics = [#tpu.dimension_semantics<parallel>], iteration_bounds = array<i64: 1>, scalar_prefetch = 0 : i64, scratch_operands = 0 : i64, tpu.core_type = #tpu.core_type<tc>, window_params = [{transform_indices = @transform_0, window_bounds = array<i64: 2, 128, 256>}, {pipeline_mode = #tpu.pipeline_mode<synchronous>, transform_indices = @transform_1, window_bounds = array<i64: 256, 9>}, {pipeline_mode = #tpu.pipeline_mode<synchronous>, transform_indices = @transform_2, window_bounds = array<i64: 128, 11>}, {pipeline_mode = #tpu.pipeline_mode<synchronous>, transform_indices = @transform_3, window_bounds = array<i64: 129, 128>}, {transform_indices = @transform_4, window_bounds = array<i64: 2, 128, 256>}]} {
    %c0 = arith.constant 0 : index
    %c0_0 = arith.constant 0 : index
    %0 = vector.load %arg2[%c0, %c0_0] : memref<256x9xf32, #tpu.memory_space<vmem>>, vector<256x9xf32>
    %c0_1 = arith.constant 0 : index
    %c0_2 = arith.constant 0 : index
    %1 = vector.load %arg3[%c0_1, %c0_2] : memref<128x11xf32, #tpu.memory_space<vmem>>, vector<128x11xf32>
    %2 = vector.extract_strided_slice %1 {offsets = [0, 0], sizes = [128, 9], strides = [1, 1]} : vector<128x11xf32> to vector<128x9xf32>
    %3 = vector.extract_strided_slice %1 {offsets = [0, 9], sizes = [128, 1], strides = [1, 1]} : vector<128x11xf32> to vector<128x1xf32>
    %4 = vector.extract_strided_slice %1 {offsets = [0, 10], sizes = [128, 1], strides = [1, 1]} : vector<128x11xf32> to vector<128x1xf32>
    %c0_3 = arith.constant 0 : index
    %c0_4 = arith.constant 0 : index
    %5 = vector.load %arg4[%c0_3, %c0_4] : memref<129x128xf32, #tpu.memory_space<vmem>>, vector<128x128xf32>
    %c128 = arith.constant 128 : index
    %c0_5 = arith.constant 0 : index
    %6 = vector.load %arg4[%c128, %c0_5] : memref<129x128xf32, #tpu.memory_space<vmem>>, vector<1x128xf32>
    %c0_6 = arith.constant 0 : index
    %c0_7 = arith.constant 0 : index
    %c0_8 = arith.constant 0 : index
    %7 = vector.load %arg1[%c0_6, %c0_7, %c0_8] : memref<2x128x256xf32, #tpu.memory_space<vmem>>, vector<1x128x256xf32>
    %8 = vector.shape_cast %7 : vector<1x128x256xf32> to vector<128x256xf32>
    %cst = arith.constant dense<0.000000e+00> : vector<128x9xf32>
    %9 = tpu.matmul %8, %0, %cst {dimension_numbers = #tpu.dot_dimension_numbers<[1], [0], [0], [1], [0, 0, 1, 1], [], []>} : vector<128x256xf32>, vector<256x9xf32>, vector<128x9xf32> -> vector<128x9xf32>
    %10 = arith.mulf %9, %2 : vector<128x9xf32>
    %cst_9 = arith.constant dense<0.000000e+00> : vector<128xf32>
    %11 = vector.multi_reduction <add>, %10, %cst_9 [1] : vector<128x9xf32> to vector<128xf32>
    %12 = vector.shape_cast %11 : vector<128xf32> to vector<128x1xf32>
    %13 = arith.addf %12, %3 : vector<128x1xf32>
    %cst_10 = arith.constant 0.000000e+00 : f32
    %14 = vector.broadcast %cst_10 : f32 to vector<128x1xf32>
    %15 = arith.maximumf %13, %14 : vector<128x1xf32>
    %cst_11 = arith.constant dense<0.000000e+00> : vector<128x1xf32>
    %16 = tpu.matmul %5, %15, %cst_11 {dimension_numbers = #tpu.dot_dimension_numbers<[1], [0], [0], [1], [0, 0, 1, 1], [], []>} : vector<128x128xf32>, vector<128x1xf32>, vector<128x1xf32> -> vector<128x1xf32>
    %17 = arith.addf %16, %4 : vector<128x1xf32>
    %cst_12 = arith.constant 0.000000e+00 : f32
    %18 = vector.broadcast %cst_12 : f32 to vector<128x1xf32>
    %19 = arith.subf %18, %17 : vector<128x1xf32>
    %20 = math.exp %19 : vector<128x1xf32>
    %cst_13 = arith.constant 1.000000e+00 : f32
    %21 = vector.broadcast %cst_13 : f32 to vector<128x1xf32>
    %22 = arith.addf %21, %20 : vector<128x1xf32>
    %cst_14 = arith.constant 1.000000e+00 : f32
    %23 = vector.broadcast %cst_14 : f32 to vector<128x1xf32>
    %24 = arith.divf %23, %22 : vector<128x1xf32>
    %cst_15 = arith.constant dense<0.000000e+00> : vector<1x256xf32>
    %25 = tpu.matmul %6, %8, %cst_15 {dimension_numbers = #tpu.dot_dimension_numbers<[1], [0], [0], [1], [0, 0, 1, 1], [], []>} : vector<1x128xf32>, vector<128x256xf32>, vector<1x256xf32> -> vector<1x256xf32>
    %cst_16 = arith.constant 0.000000e+00 : f32
    %26 = vector.broadcast %cst_16 : f32 to vector<1x256xf32>
    %27 = arith.subf %26, %25 : vector<1x256xf32>
    %28 = math.exp %27 : vector<1x256xf32>
    %cst_17 = arith.constant 1.000000e+00 : f32
    %29 = vector.broadcast %cst_17 : f32 to vector<1x256xf32>
    %30 = arith.addf %29, %28 : vector<1x256xf32>
    %cst_18 = arith.constant 1.000000e+00 : f32
    %31 = vector.broadcast %cst_18 : f32 to vector<1x256xf32>
    %32 = arith.divf %31, %30 : vector<1x256xf32>
    %cst_19 = arith.constant 1.000000e+00 : f32
    %33 = vector.broadcast %cst_19 : f32 to vector<128x1xf32>
    %34 = arith.addf %33, %24 : vector<128x1xf32>
    %35 = vector.broadcast %34 : vector<128x1xf32> to vector<128x256xf32>
    %36 = vector.broadcast %32 : vector<1x256xf32> to vector<128x256xf32>
    %37 = arith.addf %35, %36 : vector<128x256xf32>
    %38 = arith.mulf %8, %37 : vector<128x256xf32>
    %c0_20 = arith.constant 0 : index
    %c0_21 = arith.constant 0 : index
    %c0_22 = arith.constant 0 : index
    %39 = vector.load %arg5[%c0_20, %c0_21, %c0_22] : memref<2x128x256xf32, #tpu.memory_space<vmem>>, vector<1x128x256xf32>
    %40 = vector.shape_cast %39 : vector<1x128x256xf32> to vector<128x256xf32>
    %41 = vector.shape_cast %38 : vector<128x256xf32> to vector<1x128x256xf32>
    tpu.vector_store %arg5[%c0_20, %c0_21, %c0_22], %41 {strides = array<i32>} : memref<2x128x256xf32, #tpu.memory_space<vmem>>, vector<1x128x256xf32>,
    %c1 = arith.constant 1 : index
    %c0_23 = arith.constant 0 : index
    %c0_24 = arith.constant 0 : index
    %42 = vector.load %arg1[%c1, %c0_23, %c0_24] : memref<2x128x256xf32, #tpu.memory_space<vmem>>, vector<1x128x256xf32>
    %43 = vector.shape_cast %42 : vector<1x128x256xf32> to vector<128x256xf32>
    %cst_25 = arith.constant dense<0.000000e+00> : vector<128x9xf32>
    %44 = tpu.matmul %43, %0, %cst_25 {dimension_numbers = #tpu.dot_dimension_numbers<[1], [0], [0], [1], [0, 0, 1, 1], [], []>} : vector<128x256xf32>, vector<256x9xf32>, vector<128x9xf32> -> vector<128x9xf32>
    %45 = arith.mulf %44, %2 : vector<128x9xf32>
    %cst_26 = arith.constant dense<0.000000e+00> : vector<128xf32>
    %46 = vector.multi_reduction <add>, %45, %cst_26 [1] : vector<128x9xf32> to vector<128xf32>
    %47 = vector.shape_cast %46 : vector<128xf32> to vector<128x1xf32>
    %48 = arith.addf %47, %3 : vector<128x1xf32>
    %cst_27 = arith.constant 0.000000e+00 : f32
    %49 = vector.broadcast %cst_27 : f32 to vector<128x1xf32>
    %50 = arith.maximumf %48, %49 : vector<128x1xf32>
    %cst_28 = arith.constant dense<0.000000e+00> : vector<128x1xf32>
    %51 = tpu.matmul %5, %50, %cst_28 {dimension_numbers = #tpu.dot_dimension_numbers<[1], [0], [0], [1], [0, 0, 1, 1], [], []>} : vector<128x128xf32>, vector<128x1xf32>, vector<128x1xf32> -> vector<128x1xf32>
    %52 = arith.addf %51, %4 : vector<128x1xf32>
    %cst_29 = arith.constant 0.000000e+00 : f32
    %53 = vector.broadcast %cst_29 : f32 to vector<128x1xf32>
    %54 = arith.subf %53, %52 : vector<128x1xf32>
    %55 = math.exp %54 : vector<128x1xf32>
    %cst_30 = arith.constant 1.000000e+00 : f32
    %56 = vector.broadcast %cst_30 : f32 to vector<128x1xf32>
    %57 = arith.addf %56, %55 : vector<128x1xf32>
    %cst_31 = arith.constant 1.000000e+00 : f32
    %58 = vector.broadcast %cst_31 : f32 to vector<128x1xf32>
    %59 = arith.divf %58, %57 : vector<128x1xf32>
    %cst_32 = arith.constant dense<0.000000e+00> : vector<1x256xf32>
    %60 = tpu.matmul %6, %43, %cst_32 {dimension_numbers = #tpu.dot_dimension_numbers<[1], [0], [0], [1], [0, 0, 1, 1], [], []>} : vector<1x128xf32>, vector<128x256xf32>, vector<1x256xf32> -> vector<1x256xf32>
    %cst_33 = arith.constant 0.000000e+00 : f32
    %61 = vector.broadcast %cst_33 : f32 to vector<1x256xf32>
    %62 = arith.subf %61, %60 : vector<1x256xf32>
    %63 = math.exp %62 : vector<1x256xf32>
    %cst_34 = arith.constant 1.000000e+00 : f32
    %64 = vector.broadcast %cst_34 : f32 to vector<1x256xf32>
    %65 = arith.addf %64, %63 : vector<1x256xf32>
    %cst_35 = arith.constant 1.000000e+00 : f32
    %66 = vector.broadcast %cst_35 : f32 to vector<1x256xf32>
    %67 = arith.divf %66, %65 : vector<1x256xf32>
    %cst_36 = arith.constant 1.000000e+00 : f32
    %68 = vector.broadcast %cst_36 : f32 to vector<128x1xf32>
    %69 = arith.addf %68, %59 : vector<128x1xf32>
    %70 = vector.broadcast %69 : vector<128x1xf32> to vector<128x256xf32>
    %71 = vector.broadcast %67 : vector<1x256xf32> to vector<128x256xf32>
    %72 = arith.addf %70, %71 : vector<128x256xf32>
    %73 = arith.mulf %43, %72 : vector<128x256xf32>
    %c1_37 = arith.constant 1 : index
    %c0_38 = arith.constant 0 : index
    %c0_39 = arith.constant 0 : index
    %74 = vector.load %arg5[%c1_37, %c0_38, %c0_39] : memref<2x128x256xf32, #tpu.memory_space<vmem>>, vector<1x128x256xf32>
    %75 = vector.shape_cast %74 : vector<1x128x256xf32> to vector<128x256xf32>
    %76 = vector.shape_cast %73 : vector<128x256xf32> to vector<1x128x256xf32>
    tpu.vector_store %arg5[%c1_37, %c0_38, %c0_39], %76 {strides = array<i32>} : memref<2x128x256xf32, #tpu.memory_space<vmem>>, vector<1x128x256xf32>,
    return
  }
  func.func @transform_0(%arg0: i32) -> (i32, i32, i32) {
    %c0_i32 = arith.constant 0 : i32
    %c0_i32_0 = arith.constant 0 : i32
    %c0_i32_1 = arith.constant 0 : i32
    return %arg0, %c0_i32, %c0_i32_0 : i32, i32, i32
  }
  func.func @transform_1(%arg0: i32) -> (i32, i32) {
    %c0_i32 = arith.constant 0 : i32
    %c0_i32_0 = arith.constant 0 : i32
    %c0_i32_1 = arith.constant 0 : i32
    return %c0_i32, %c0_i32_0 : i32, i32
  }
  func.func @transform_2(%arg0: i32) -> (i32, i32) {
    %c0_i32 = arith.constant 0 : i32
    %c0_i32_0 = arith.constant 0 : i32
    %c0_i32_1 = arith.constant 0 : i32
    return %c0_i32, %c0_i32_0 : i32, i32
  }
  func.func @transform_3(%arg0: i32) -> (i32, i32) {
    %c0_i32 = arith.constant 0 : i32
    %c0_i32_0 = arith.constant 0 : i32
    %c0_i32_1 = arith.constant 0 : i32
    return %c0_i32, %c0_i32_0 : i32, i32
  }
  func.func @transform_4(%arg0: i32) -> (i32, i32, i32) {
    %c0_i32 = arith.constant 0 : i32
    %c0_i32_0 = arith.constant 0 : i32
    %c0_i32_1 = arith.constant 0 : i32
    return %arg0, %c0_i32, %c0_i32_0 : i32, i32, i32
  }
}

</mosaic_0001>

<llo_original>
// kernel: attention_forward.1
$region0: #{attention_forward.1}
  #allocation0 [shape = 'u32[]', space=smem, size = 0x4, offset = 0x4, fixed_abs, tag = 'smem constant byte address 0x4 - core index']
  #allocation1 [shape = 'u32[144,128]{1,0:T(1,128)}', space=vmem, size = 0x12000, scoped, tag = 'internal scratch']
  %s0 = inlined_call_operand.vmem [shape: f32[2,128,256], index: 0, kind: input, shape index: {}]
  %s1 = inlined_call_operand.vmem [shape: f32[256,9], index: 1, kind: input, shape index: {}]
  %s2 = inlined_call_operand.vmem [shape: f32[128,11], index: 2, kind: input, shape index: {}]
  %s3 = inlined_call_operand.vmem [shape: f32[129,128], index: 3, kind: input, shape index: {}]
  %s4 = inlined_call_operand.vmem [shape: f32[2,128,256], index: 4, kind: output, shape index: {}]
  %s5 = sld [smem:[#allocation0]]
  $region26: #{attention_forward.1} parent=0
    _
  %s7 = ssub.s32 1, %s5
  %s8 = scalar_select 0, %s7, %s5
  // Predicated region
  $region2: #{attention_forward.1} parent=0 // pred_check
    _
  $region3: #{attention_forward.1} parent=0 // pred_check_branch
    %10 = sbr.rel (0) target = $region5
  $region4: #{attention_forward.1} parent=0 // pred_region
    _
  $region5: #{attention_forward.1} parent=0 // pred_fallthru
    _
  // Predicated region
  $region6: #{attention_forward.1} parent=0 // pred_check
    _
  $region7: #{attention_forward.1} parent=0 // pred_check_branch
    %12 = sbr.rel (0) target = $region9
  $region8: #{attention_forward.1} parent=0 // pred_region
    _
  $region9: #{attention_forward.1} parent=0 // pred_fallthru
    _
  // Predicated region
  $region10: #{attention_forward.1} parent=0 // pred_check
    _
  $region11: #{attention_forward.1} parent=0 // pred_check_branch
    %14 = sbr.rel (0) target = $region13
  $region12: #{attention_forward.1} parent=0 // pred_region
    _
  $region13: #{attention_forward.1} parent=0 // pred_fallthru
    _
  // Predicated region
  $region14: #{attention_forward.1} parent=0 // pred_check
    _
  $region15: #{attention_forward.1} parent=0 // pred_check_branch
    %16 = sbr.rel (0) target = $region17
  $region16: #{attention_forward.1} parent=0 // pred_region
    _
  $region17: #{attention_forward.1} parent=0 // pred_fallthru
    _
  %v17 = vld [vmem:[%s1] sm:$0xff]
  %v18 = vld [vmem:[%s1 + $0x8] sm:$0xff]
  %v19 = vld [vmem:[%s1 + $0x10] sm:$0xff]
  %v20 = vld [vmem:[%s1 + $0x18] sm:$0xff]
  %v21 = vld [vmem:[%s1 + $0x20] sm:$0xff]
  %v22 = vld [vmem:[%s1 + $0x28] sm:$0xff]
  %v23 = vld [vmem:[%s1 + $0x30] sm:$0xff]
  %v24 = vld [vmem:[%s1 + $0x38] sm:$0xff]
  %v25 = vld [vmem:[%s1 + $0x40] sm:$0xff]
  %v26 = vld [vmem:[%s1 + $0x48] sm:$0xff]
  %v27 = vld [vmem:[%s1 + $0x50] sm:$0xff]
  %v28 = vld [vmem:[%s1 + $0x58] sm:$0xff]
  %v29 = vld [vmem:[%s1 + $0x60] sm:$0xff]
  %v30 = vld [vmem:[%s1 + $0x68] sm:$0xff]
  %v31 = vld [vmem:[%s1 + $0x70] sm:$0xff]
  %v32 = vld [vmem:[%s1 + $0x78] sm:$0xff]
  %v33 = vld [vmem:[%s1 + $0x80] sm:$0xff]
  %v34 = vld [vmem:[%s1 + $0x88] sm:$0xff]
  %v35 = vld [vmem:[%s1 + $0x90] sm:$0xff]
  %v36 = vld [vmem:[%s1 + $0x98] sm:$0xff]
  %v37 = vld [vmem:[%s1 + $0xa0] sm:$0xff]
  %v38 = vld [vmem:[%s1 + $0xa8] sm:$0xff]
  %v39 = vld [vmem:[%s1 + $0xb0] sm:$0xff]
  %v40 = vld [vmem:[%s1 + $0xb8] sm:$0xff]
  %v41 = vld [vmem:[%s1 + $0xc0] sm:$0xff]
  %v42 = vld [vmem:[%s1 + $0xc8] sm:$0xff]
  %v43 = vld [vmem:[%s1 + $0xd0] sm:$0xff]
  %v44 = vld [vmem:[%s1 + $0xd8] sm:$0xff]
  %v45 = vld [vmem:[%s1 + $0xe0] sm:$0xff]
  %v46 = vld [vmem:[%s1 + $0xe8] sm:$0xff]
  %v47 = vld [vmem:[%s1 + $0xf0] sm:$0xff]
  %v48 = vld [vmem:[%s1 + $0xf8] sm:$0xff]
  %v49 = vld [vmem:[%s2] sm:$0xff]
  %v50 = vld [vmem:[%s2 + $0x8] sm:$0xff]
  %v51 = vld [vmem:[%s2 + $0x10] sm:$0xff]
  %v52 = vld [vmem:[%s2 + $0x18] sm:$0xff]
  %v53 = vld [vmem:[%s2 + $0x20] sm:$0xff]
  %v54 = vld [vmem:[%s2 + $0x28] sm:$0xff]
  %v55 = vld [vmem:[%s2 + $0x30] sm:$0xff]
  %v56 = vld [vmem:[%s2 + $0x38] sm:$0xff]
  %v57 = vld [vmem:[%s2 + $0x40] sm:$0xff]
  %v58 = vld [vmem:[%s2 + $0x48] sm:$0xff]
  %v59 = vld [vmem:[%s2 + $0x50] sm:$0xff]
  %v60 = vld [vmem:[%s2 + $0x58] sm:$0xff]
  %v61 = vld [vmem:[%s2 + $0x60] sm:$0xff]
  %v62 = vld [vmem:[%s2 + $0x68] sm:$0xff]
  %v63 = vld [vmem:[%s2 + $0x70] sm:$0xff]
  %v64 = vld [vmem:[%s2 + $0x78] sm:$0xff]
  %v65 = vld [vmem:[%s3] sm:$0xff]
  %v66 = vld [vmem:[%s3 + $0x8] sm:$0xff]
  %v67 = vld [vmem:[%s3 + $0x10] sm:$0xff]
  %v68 = vld [vmem:[%s3 + $0x18] sm:$0xff]
  %v69 = vld [vmem:[%s3 + $0x20] sm:$0xff]
  %v70 = vld [vmem:[%s3 + $0x28] sm:$0xff]
  %v71 = vld [vmem:[%s3 + $0x30] sm:$0xff]
  %v72 = vld [vmem:[%s3 + $0x38] sm:$0xff]
  %v73 = vld [vmem:[%s3 + $0x40] sm:$0xff]
  %v74 = vld [vmem:[%s3 + $0x48] sm:$0xff]
  %v75 = vld [vmem:[%s3 + $0x50] sm:$0xff]
  %v76 = vld [vmem:[%s3 + $0x58] sm:$0xff]
  %v77 = vld [vmem:[%s3 + $0x60] sm:$0xff]
  %v78 = vld [vmem:[%s3 + $0x68] sm:$0xff]
  %v79 = vld [vmem:[%s3 + $0x70] sm:$0xff]
  %v80 = vld [vmem:[%s3 + $0x78] sm:$0xff]
  %v81 = vld [vmem:[%s3 + $0x80] sm:$0x1]
  %v82 = vld [vmem:[%s0] sm:$0xff]
  %v83 = vld [vmem:[%s0 + $0x8] sm:$0xff]
  %v84 = vld [vmem:[%s0 + $0x10] sm:$0xff]
  %v85 = vld [vmem:[%s0 + $0x18] sm:$0xff]
  %v86 = vld [vmem:[%s0 + $0x20] sm:$0xff]
  %v87 = vld [vmem:[%s0 + $0x28] sm:$0xff]
  %v88 = vld [vmem:[%s0 + $0x30] sm:$0xff]
  %v89 = vld [vmem:[%s0 + $0x38] sm:$0xff]
  %v90 = vld [vmem:[%s0 + $0x40] sm:$0xff]
  %v91 = vld [vmem:[%s0 + $0x48] sm:$0xff]
  %v92 = vld [vmem:[%s0 + $0x50] sm:$0xff]
  %v93 = vld [vmem:[%s0 + $0x58] sm:$0xff]
  %v94 = vld [vmem:[%s0 + $0x60] sm:$0xff]
  %v95 = vld [vmem:[%s0 + $0x68] sm:$0xff]
  %v96 = vld [vmem:[%s0 + $0x70] sm:$0xff]
  %v97 = vld [vmem:[%s0 + $0x78] sm:$0xff]
  %v98 = vld [vmem:[%s0 + $0x80] sm:$0xff]
  %v99 = vld [vmem:[%s0 + $0x88] sm:$0xff]
  %v100 = vld [vmem:[%s0 + $0x90] sm:$0xff]
  %v101 = vld [vmem:[%s0 + $0x98] sm:$0xff]
  %v102 = vld [vmem:[%s0 + $0xa0] sm:$0xff]
  %v103 = vld [vmem:[%s0 + $0xa8] sm:$0xff]
  %v104 = vld [vmem:[%s0 + $0xb0] sm:$0xff]
  %v105 = vld [vmem:[%s0 + $0xb8] sm:$0xff]
  %v106 = vld [vmem:[%s0 + $0xc0] sm:$0xff]
  %v107 = vld [vmem:[%s0 + $0xc8] sm:$0xff]
  %v108 = vld [vmem:[%s0 + $0xd0] sm:$0xff]
  %v109 = vld [vmem:[%s0 + $0xd8] sm:$0xff]
  %v110 = vld [vmem:[%s0 + $0xe0] sm:$0xff]
  %v111 = vld [vmem:[%s0 + $0xe8] sm:$0xff]
  %v112 = vld [vmem:[%s0 + $0xf0] sm:$0xff]
  %v113 = vld [vmem:[%s0 + $0xf8] sm:$0xff]
  %114 = vmatprep.subr.mxu0 0.0
  %115 = vmatpush1.msra.mxu0 %v17
  %116 = vmatprep.subr.mxu0 0.0
  %117 = vmatpush1.msra.mxu0 %v18
  %118 = vmatprep.subr.mxu0 0.0
  %119 = vmatpush1.msra.mxu0 %v19
  %120 = vmatprep.subr.mxu0 0.0
  %121 = vmatpush1.msra.mxu0 %v20
  %122 = vmatprep.subr.mxu0 0.0
  %123 = vmatpush1.msra.mxu0 %v21
  %124 = vmatprep.subr.mxu0 0.0
  %125 = vmatpush1.msra.mxu0 %v22
  %126 = vmatprep.subr.mxu0 0.0
  %127 = vmatpush1.msra.mxu0 %v23
  %128 = vmatprep.subr.mxu0 0.0
  %129 = vmatpush1.msra.mxu0 %v24
  %130 = vmatprep.subr.mxu0 0.0
  %131 = vmatpush1.msra.mxu0 %v25
  %132 = vmatprep.subr.mxu0 0.0
  %133 = vmatpush1.msra.mxu0 %v26
  %134 = vmatprep.subr.mxu0 0.0
  %135 = vmatpush1.msra.mxu0 %v27
  %136 = vmatprep.subr.mxu0 0.0
  %137 = vmatpush1.msra.mxu0 %v28
  %138 = vmatprep.subr.mxu0 0.0
  %139 = vmatpush1.msra.mxu0 %v29
  %140 = vmatprep.subr.mxu0 0.0
  %141 = vmatpush1.msra.mxu0 %v30
  %142 = vmatprep.subr.mxu0 0.0
  %143 = vmatpush1.msra.mxu0 %v31
  %144 = vmatprep.subr.mxu0 0.0
  %145 = vmatpush1.msra.mxu0 %v32
  %146 = vmatprep.subr.mxu0 0.0
  %147 = vmatpush1.msra.mxu0 %v33
  %148 = vmatprep.subr.mxu0 0.0
  %149 = vmatpush1.msra.mxu0 %v34
  %150 = vmatprep.subr.mxu0 0.0
  %151 = vmatpush1.msra.mxu0 %v35
  %152 = vmatprep.subr.mxu0 0.0
  %153 = vmatpush1.msra.mxu0 %v36
  %154 = vmatprep.subr.mxu0 0.0
  %155 = vmatpush1.msra.mxu0 %v37
  %156 = vmatprep.subr.mxu0 0.0
  %157 = vmatpush1.msra.mxu0 %v38
  %158 = vmatprep.subr.mxu0 0.0
  %159 = vmatpush1.msra.mxu0 %v39
  %160 = vmatprep.subr.mxu0 0.0
  %161 = vmatpush1.msra.mxu0 %v40
  %162 = vmatprep.subr.mxu0 0.0
  %163 = vmatpush1.msra.mxu0 %v41
  %164 = vmatprep.subr.mxu0 0.0
  %165 = vmatpush1.msra.mxu0 %v42
  %166 = vmatprep.subr.mxu0 0.0
  %167 = vmatpush1.msra.mxu0 %v43
  %168 = vmatprep.subr.mxu0 0.0
  %169 = vmatpush1.msra.mxu0 %v44
  %170 = vmatprep.subr.mxu0 0.0
  %171 = vmatpush1.msra.mxu0 %v45
  %172 = vmatprep.subr.mxu0 0.0
  %173 = vmatpush1.msra.mxu0 %v46
  %174 = vmatprep.subr.mxu0 0.0
  %175 = vmatpush1.msra.mxu0 %v47
  %176 = vmatprep.subr.mxu0 0.0
  %177 = vmatpush1.msra.mxu0 %v48
  %178 = vmatprep.mubr.f32.mxu0 %v83
  %179 = vmatmul.mubr.f32.gmra.mrb[0].mxu0 %v82
  %v180 = vpop.f32.mrb[0].mxu0
  %v181 = vadd.f32 0.0, %v180
  %v182 = vpop.f32.mrb[0].mxu0
  %183 = vmatprep.mubr.f32.mxu0 %v85
  %184 = vmatmul.mubr.f32.gmra.mrb[0].mxu0 %v84
  %v185 = vpop.f32.mrb[0].mxu0
  %v186 = vadd.f32 0.0, %v185
  %v187 = vpop.f32.mrb[0].mxu0
  %188 = vmatprep.mubr.f32.mxu0 %v87
  %189 = vmatmul.mubr.f32.gmra.mrb[0].mxu0 %v86
  %v190 = vpop.f32.mrb[0].mxu0
  %v191 = vadd.f32 0.0, %v190
  %v192 = vpop.f32.mrb[0].mxu0
  %193 = vmatprep.mubr.f32.mxu0 %v89
  %194 = vmatmul.mubr.f32.gmra.mrb[0].mxu0 %v88
  %v195 = vpop.f32.mrb[0].mxu0
  %v196 = vadd.f32 0.0, %v195
  %v197 = vpop.f32.mrb[0].mxu0
  %198 = vmatprep.mubr.f32.mxu0 %v91
  %199 = vmatmul.mubr.f32.gmra.mrb[0].mxu0 %v90
  %v200 = vpop.f32.mrb[0].mxu0
  %v201 = vadd.f32 0.0, %v200
  %v202 = vpop.f32.mrb[0].mxu0
  %203 = vmatprep.mubr.f32.mxu0 %v93
  %204 = vmatmul.mubr.f32.gmra.mrb[0].mxu0 %v92
  %v205 = vpop.f32.mrb[0].mxu0
  %v206 = vadd.f32 0.0, %v205
  %v207 = vpop.f32.mrb[0].mxu0
  %208 = vmatprep.mubr.f32.mxu0 %v95
  %209 = vmatmul.mubr.f32.gmra.mrb[0].mxu0 %v94
  %v210 = vpop.f32.mrb[0].mxu0
  %v211 = vadd.f32 0.0, %v210
  %v212 = vpop.f32.mrb[0].mxu0
  %213 = vmatprep.mubr.f32.mxu0 %v97
  %214 = vmatmul.mubr.f32.gmra.mrb[0].mxu0 %v96
  %v215 = vpop.f32.mrb[0].mxu0
  %v216 = vadd.f32 0.0, %v215
  %v217 = vpop.f32.mrb[0].mxu0
  %218 = vmatprep.mubr.f32.mxu0 %v99
  %219 = vmatmul.mubr.f32.gmra.mrb[0].mxu0 %v98
  %v220 = vpop.f32.mrb[0].mxu0
  %v221 = vadd.f32 0.0, %v220
  %v222 = vpop.f32.mrb[0].mxu0
  %223 = vmatprep.mubr.f32.mxu0 %v101
  %224 = vmatmul.mubr.f32.gmra.mrb[0].mxu0 %v100
  %v225 = vpop.f32.mrb[0].mxu0
  %v226 = vadd.f32 0.0, %v225
  %v227 = vpop.f32.mrb[0].mxu0
  %228 = vmatprep.mubr.f32.mxu0 %v103
  %229 = vmatmul.mubr.f32.gmra.mrb[0].mxu0 %v102
  %v230 = vpop.f32.mrb[0].mxu0
  %v231 = vadd.f32 0.0, %v230
  %v232 = vpop.f32.mrb[0].mxu0
  %233 = vmatprep.mubr.f32.mxu0 %v105
  %234 = vmatmul.mubr.f32.gmra.mrb[0].mxu0 %v104
  %v235 = vpop.f32.mrb[0].mxu0
  %v236 = vadd.f32 0.0, %v235
  %v237 = vpop.f32.mrb[0].mxu0
  %238 = vmatprep.mubr.f32.mxu0 %v107
  %239 = vmatmul.mubr.f32.gmra.mrb[0].mxu0 %v106
  %v240 = vpop.f32.mrb[0].mxu0
  %v241 = vadd.f32 0.0, %v240
  %v242 = vpop.f32.mrb[0].mxu0
  %243 = vmatprep.mubr.f32.mxu0 %v109
  %244 = vmatmul.mubr.f32.gmra.mrb[0].mxu0 %v108
  %v245 = vpop.f32.mrb[0].mxu0
  %v246 = vadd.f32 0.0, %v245
  %v247 = vpop.f32.mrb[0].mxu0
  %248 = vmatprep.mubr.f32.mxu0 %v111
  %249 = vmatmul.mubr.f32.gmra.mrb[0].mxu0 %v110
  %v250 = vpop.f32.mrb[0].mxu0
  %v251 = vadd.f32 0.0, %v250
  %v252 = vpop.f32.mrb[0].mxu0
  %253 = vmatprep.mubr.f32.mxu0 %v113
  %254 = vmatmul.mubr.f32.gmra.mrb[0].mxu0 %v112
  %v255 = vpop.f32.mrb[0].mxu0
  %v256 = vadd.f32 0.0, %v255
  %v257 = vpop.f32.mrb[0].mxu0
  %258 = vdwg.mxu0
  %v259 = vmul.f32 %v181, %v49
  %v260 = vmul.f32 %v186, %v50
  %v261 = vmul.f32 %v191, %v51
  %v262 = vmul.f32 %v196, %v52
  %v263 = vmul.f32 %v201, %v53
  %v264 = vmul.f32 %v206, %v54
  %v265 = vmul.f32 %v211, %v55
  %v266 = vmul.f32 %v216, %v56
  %v267 = vmul.f32 %v221, %v57
  %v268 = vmul.f32 %v226, %v58
  %v269 = vmul.f32 %v231, %v59
  %v270 = vmul.f32 %v236, %v60
  %v271 = vmul.f32 %v241, %v61
  %v272 = vmul.f32 %v246, %v62
  %v273 = vmul.f32 %v251, %v63
  %v274 = vmul.f32 %v256, %v64
  %vm275 = vcmask 72704
  %v276 = vsel %vm275, %v259, 0.0
  %277 = vadd.xlane.f32.xlu0 %v276
  %v278 = vpop.xlane.xlu0 %277
  %v279 = vsel %vm275, %v260, 0.0
  %280 = vadd.xlane.f32.xlu0 %v279
  %v281 = vpop.xlane.xlu0 %280
  %v282 = vsel %vm275, %v261, 0.0
  %283 = vadd.xlane.f32.xlu0 %v282
  %v284 = vpop.xlane.xlu0 %283
  %v285 = vsel %vm275, %v262, 0.0
  %286 = vadd.xlane.f32.xlu0 %v285
  %v287 = vpop.xlane.xlu0 %286
  %v288 = vsel %vm275, %v263, 0.0
  %289 = vadd.xlane.f32.xlu0 %v288
  %v290 = vpop.xlane.xlu0 %289
  %v291 = vsel %vm275, %v264, 0.0
  %292 = vadd.xlane.f32.xlu0 %v291
  %v293 = vpop.xlane.xlu0 %292
  %v294 = vsel %vm275, %v265, 0.0
  %295 = vadd.xlane.f32.xlu0 %v294
  %v296 = vpop.xlane.xlu0 %295
  %v297 = vsel %vm275, %v266, 0.0
  %298 = vadd.xlane.f32.xlu0 %v297
  %v299 = vpop.xlane.xlu0 %298
  %v300 = vsel %vm275, %v267, 0.0
  %301 = vadd.xlane.f32.xlu0 %v300
  %v302 = vpop.xlane.xlu0 %301
  %v303 = vsel %vm275, %v268, 0.0
  %304 = vadd.xlane.f32.xlu0 %v303
  %v305 = vpop.xlane.xlu0 %304
  %v306 = vsel %vm275, %v269, 0.0
  %307 = vadd.xlane.f32.xlu0 %v306
  %v308 = vpop.xlane.xlu0 %307
  %v309 = vsel %vm275, %v270, 0.0
  %310 = vadd.xlane.f32.xlu0 %v309
  %v311 = vpop.xlane.xlu0 %310
  %v312 = vsel %vm275, %v271, 0.0
  %313 = vadd.xlane.f32.xlu0 %v312
  %v314 = vpop.xlane.xlu0 %313
  %v315 = vsel %vm275, %v272, 0.0
  %316 = vadd.xlane.f32.xlu0 %v315
  %v317 = vpop.xlane.xlu0 %316
  %v318 = vsel %vm275, %v273, 0.0
  %319 = vadd.xlane.f32.xlu0 %v318
  %v320 = vpop.xlane.xlu0 %319
  %v321 = vsel %vm275, %v274, 0.0
  %322 = vadd.xlane.f32.xlu0 %v321
  %v323 = vpop.xlane.xlu0 %322
  %v324 = vadd.f32 %v278, %v49
  %v325 = vadd.f32 %v281, %v50
  %v326 = vadd.f32 %v284, %v51
  %v327 = vadd.f32 %v287, %v52
  %v328 = vadd.f32 %v290, %v53
  %v329 = vadd.f32 %v293, %v54
  %v330 = vadd.f32 %v296, %v55
  %v331 = vadd.f32 %v299, %v56
  %v332 = vadd.f32 %v302, %v57
  %v333 = vadd.f32 %v305, %v58
  %v334 = vadd.f32 %v308, %v59
  %v335 = vadd.f32 %v311, %v60
  %v336 = vadd.f32 %v314, %v61
  %v337 = vadd.f32 %v317, %v62
  %v338 = vadd.f32 %v320, %v63
  %v339 = vadd.f32 %v323, %v64
  %v340 = vmax.f32 %v324, 0.0
  %v341 = vmax.f32 %v325, 0.0
  %v342 = vmax.f32 %v326, 0.0
  %v343 = vmax.f32 %v327, 0.0
  %v344 = vmax.f32 %v328, 0.0
  %v345 = vmax.f32 %v329, 0.0
  %v346 = vmax.f32 %v330, 0.0
  %v347 = vmax.f32 %v331, 0.0
  %v348 = vmax.f32 %v332, 0.0
  %v349 = vmax.f32 %v333, 0.0
  %v350 = vmax.f32 %v334, 0.0
  %v351 = vmax.f32 %v335, 0.0
  %v352 = vmax.f32 %v336, 0.0
  %v353 = vmax.f32 %v337, 0.0
  %v354 = vmax.f32 %v338, 0.0
  %v355 = vmax.f32 %v339, 0.0
  %372 = vrot.lane.b32.xlu0 %v340, 119
  %v373 = vpop.permute.xlu0 %372
  %374 = vrot.lane.b32.xlu0 %v341, 119
  %v375 = vpop.permute.xlu0 %374
  %376 = vrot.lane.b32.xlu0 %v342, 119
  %v377 = vpop.permute.xlu0 %376
  %378 = vrot.lane.b32.xlu0 %v343, 119
  %v379 = vpop.permute.xlu0 %378
  %380 = vrot.lane.b32.xlu0 %v344, 119
  %v381 = vpop.permute.xlu0 %380
  %382 = vrot.lane.b32.xlu0 %v345, 119
  %v383 = vpop.permute.xlu0 %382
  %384 = vrot.lane.b32.xlu0 %v346, 119
  %v385 = vpop.permute.xlu0 %384
  %386 = vrot.lane.b32.xlu0 %v347, 119
  %v387 = vpop.permute.xlu0 %386
  %388 = vrot.lane.b32.xlu0 %v348, 119
  %v389 = vpop.permute.xlu0 %388
  %390 = vrot.lane.b32.xlu0 %v349, 119
  %v391 = vpop.permute.xlu0 %390
  %392 = vrot.lane.b32.xlu0 %v350, 119
  %v393 = vpop.permute.xlu0 %392
  %394 = vrot.lane.b32.xlu0 %v351, 119
  %v395 = vpop.permute.xlu0 %394
  %396 = vrot.lane.b32.xlu0 %v352, 119
  %v397 = vpop.permute.xlu0 %396
  %398 = vrot.lane.b32.xlu0 %v353, 119
  %v399 = vpop.permute.xlu0 %398
  %400 = vrot.lane.b32.xlu0 %v354, 119
  %v401 = vpop.permute.xlu0 %400
  %402 = vrot.lane.b32.xlu0 %v355, 119
  %v403 = vpop.permute.xlu0 %402
  %436 = vrot.lane.b32.xlu0 %v49, 118
  %v437 = vpop.permute.xlu0 %436
  %438 = vrot.lane.b32.xlu0 %v50, 118
  %v439 = vpop.permute.xlu0 %438
  %440 = vrot.lane.b32.xlu0 %v51, 118
  %v441 = vpop.permute.xlu0 %440
  %442 = vrot.lane.b32.xlu0 %v52, 118
  %v443 = vpop.permute.xlu0 %442
  %444 = vrot.lane.b32.xlu0 %v53, 118
  %v445 = vpop.permute.xlu0 %444
  %446 = vrot.lane.b32.xlu0 %v54, 118
  %v447 = vpop.permute.xlu0 %446
  %448 = vrot.lane.b32.xlu0 %v55, 118
  %v449 = vpop.permute.xlu0 %448
  %450 = vrot.lane.b32.xlu0 %v56, 118
  %v451 = vpop.permute.xlu0 %450
  %452 = vrot.lane.b32.xlu0 %v57, 118
  %v453 = vpop.permute.xlu0 %452
  %454 = vrot.lane.b32.xlu0 %v58, 118
  %v455 = vpop.permute.xlu0 %454
  %456 = vrot.lane.b32.xlu0 %v59, 118
  %v457 = vpop.permute.xlu0 %456
  %458 = vrot.lane.b32.xlu0 %v60, 118
  %v459 = vpop.permute.xlu0 %458
  %460 = vrot.lane.b32.xlu0 %v61, 118
  %v461 = vpop.permute.xlu0 %460
  %462 = vrot.lane.b32.xlu0 %v62, 118
  %v463 = vpop.permute.xlu0 %462
  %464 = vrot.lane.b32.xlu0 %v63, 118
  %v465 = vpop.permute.xlu0 %464
  %466 = vrot.lane.b32.xlu0 %v64, 118
  %v467 = vpop.permute.xlu0 %466
  %484 = vmatprep.subr.mxu0 0.0
  %485 = vmatpush1.msra.mxu0 %v373
  %486 = vmatprep.subr.mxu0 0.0
  %487 = vmatpush1.msra.mxu0 %v375
  %488 = vmatprep.subr.mxu0 0.0
  %489 = vmatpush1.msra.mxu0 %v377
  %490 = vmatprep.subr.mxu0 0.0
  %491 = vmatpush1.msra.mxu0 %v379
  %492 = vmatprep.subr.mxu0 0.0
  %493 = vmatpush1.msra.mxu0 %v381
  %494 = vmatprep.subr.mxu0 0.0
  %495 = vmatpush1.msra.mxu0 %v383
  %496 = vmatprep.subr.mxu0 0.0
  %497 = vmatpush1.msra.mxu0 %v385
  %498 = vmatprep.subr.mxu0 0.0
  %499 = vmatpush1.msra.mxu0 %v387
  %500 = vmatprep.subr.mxu0 0.0
  %501 = vmatpush1.msra.mxu0 %v389
  %502 = vmatprep.subr.mxu0 0.0
  %503 = vmatpush1.msra.mxu0 %v391
  %504 = vmatprep.subr.mxu0 0.0
  %505 = vmatpush1.msra.mxu0 %v393
  %506 = vmatprep.subr.mxu0 0.0
  %507 = vmatpush1.msra.mxu0 %v395
  %508 = vmatprep.subr.mxu0 0.0
  %509 = vmatpush1.msra.mxu0 %v397
  %510 = vmatprep.subr.mxu0 0.0
  %511 = vmatpush1.msra.mxu0 %v399
  %512 = vmatprep.subr.mxu0 0.0
  %513 = vmatpush1.msra.mxu0 %v401
  %514 = vmatprep.subr.mxu0 0.0
  %515 = vmatpush1.msra.mxu0 %v403
  %516 = vmatprep.subr.mxu0 0.0
  %517 = vmatpush1.msra.mxu0 0.0
  %518 = vmatprep.subr.mxu0 0.0
  %519 = vmatpush1.msra.mxu0 0.0
  %520 = vmatprep.subr.mxu0 0.0
  %521 = vmatpush1.msra.mxu0 0.0
  %522 = vmatprep.subr.mxu0 0.0
  %523 = vmatpush1.msra.mxu0 0.0
  %524 = vmatprep.subr.mxu0 0.0
  %525 = vmatpush1.msra.mxu0 0.0
  %526 = vmatprep.subr.mxu0 0.0
  %527 = vmatpush1.msra.mxu0 0.0
  %528 = vmatprep.subr.mxu0 0.0
  %529 = vmatpush1.msra.mxu0 0.0
  %530 = vmatprep.subr.mxu0 0.0
  %531 = vmatpush1.msra.mxu0 0.0
  %532 = vmatprep.subr.mxu0 0.0
  %533 = vmatpush1.msra.mxu0 0.0
  %534 = vmatprep.subr.mxu0 0.0
  %535 = vmatpush1.msra.mxu0 0.0
  %536 = vmatprep.subr.mxu0 0.0
  %537 = vmatpush1.msra.mxu0 0.0
  %538 = vmatprep.subr.mxu0 0.0
  %539 = vmatpush1.msra.mxu0 0.0
  %540 = vmatprep.subr.mxu0 0.0
  %541 = vmatpush1.msra.mxu0 0.0
  %542 = vmatprep.subr.mxu0 0.0
  %543 = vmatpush1.msra.mxu0 0.0
  %544 = vmatprep.subr.mxu0 0.0
  %545 = vmatpush1.msra.mxu0 0.0
  %546 = vmatprep.subr.mxu0 0.0
  %547 = vmatpush1.msra.mxu0 0.0
  %548 = vmatprep.mubr.f32.mxu0 0.0
  %549 = vmatmul.mubr.f32.gmra.mrb[0].mxu0 %v65
  %v550 = vpop.f32.mrb[0].mxu0
  %v551 = vadd.f32 %v437, %v550
  %v552 = vpop.f32.mrb[0].mxu0
  %553 = vmatprep.mubr.f32.mxu0 0.0
  %554 = vmatmul.mubr.f32.gmra.mrb[0].mxu0 %v66
  %v555 = vpop.f32.mrb[0].mxu0
  %v556 = vadd.f32 %v439, %v555
  %v557 = vpop.f32.mrb[0].mxu0
  %558 = vmatprep.mubr.f32.mxu0 0.0
  %559 = vmatmul.mubr.f32.gmra.mrb[0].mxu0 %v67
  %v560 = vpop.f32.mrb[0].mxu0
  %v561 = vadd.f32 %v441, %v560
  %v562 = vpop.f32.mrb[0].mxu0
  %563 = vmatprep.mubr.f32.mxu0 0.0
  %564 = vmatmul.mubr.f32.gmra.mrb[0].mxu0 %v68
  %v565 = vpop.f32.mrb[0].mxu0
  %v566 = vadd.f32 %v443, %v565
  %v567 = vpop.f32.mrb[0].mxu0
  %568 = vmatprep.mubr.f32.mxu0 0.0
  %569 = vmatmul.mubr.f32.gmra.mrb[0].mxu0 %v69
  %v570 = vpop.f32.mrb[0].mxu0
  %v571 = vadd.f32 %v445, %v570
  %v572 = vpop.f32.mrb[0].mxu0
  %573 = vmatprep.mubr.f32.mxu0 0.0
  %574 = vmatmul.mubr.f32.gmra.mrb[0].mxu0 %v70
  %v575 = vpop.f32.mrb[0].mxu0
  %v576 = vadd.f32 %v447, %v575
  %v577 = vpop.f32.mrb[0].mxu0
  %578 = vmatprep.mubr.f32.mxu0 0.0
  %579 = vmatmul.mubr.f32.gmra.mrb[0].mxu0 %v71
  %v580 = vpop.f32.mrb[0].mxu0
  %v581 = vadd.f32 %v449, %v580
  %v582 = vpop.f32.mrb[0].mxu0
  %583 = vmatprep.mubr.f32.mxu0 0.0
  %584 = vmatmul.mubr.f32.gmra.mrb[0].mxu0 %v72
  %v585 = vpop.f32.mrb[0].mxu0
  %v586 = vadd.f32 %v451, %v585
  %v587 = vpop.f32.mrb[0].mxu0
  %588 = vmatprep.mubr.f32.mxu0 0.0
  %589 = vmatmul.mubr.f32.gmra.mrb[0].mxu0 %v73
  %v590 = vpop.f32.mrb[0].mxu0
  %v591 = vadd.f32 %v453, %v590
  %v592 = vpop.f32.mrb[0].mxu0
  %593 = vmatprep.mubr.f32.mxu0 0.0
  %594 = vmatmul.mubr.f32.gmra.mrb[0].mxu0 %v74
  %v595 = vpop.f32.mrb[0].mxu0
  %v596 = vadd.f32 %v455, %v595
  %v597 = vpop.f32.mrb[0].mxu0
  %598 = vmatprep.mubr.f32.mxu0 0.0
  %599 = vmatmul.mubr.f32.gmra.mrb[0].mxu0 %v75
  %v600 = vpop.f32.mrb[0].mxu0
  %v601 = vadd.f32 %v457, %v600
  %v602 = vpop.f32.mrb[0].mxu0
  %603 = vmatprep.mubr.f32.mxu0 0.0
  %604 = vmatmul.mubr.f32.gmra.mrb[0].mxu0 %v76
  %v605 = vpop.f32.mrb[0].mxu0
  %v606 = vadd.f32 %v459, %v605
  %v607 = vpop.f32.mrb[0].mxu0
  %608 = vmatprep.mubr.f32.mxu0 0.0
  %609 = vmatmul.mubr.f32.gmra.mrb[0].mxu0 %v77
  %v610 = vpop.f32.mrb[0].mxu0
  %v611 = vadd.f32 %v461, %v610
  %v612 = vpop.f32.mrb[0].mxu0
  %613 = vmatprep.mubr.f32.mxu0 0.0
  %614 = vmatmul.mubr.f32.gmra.mrb[0].mxu0 %v78
  %v615 = vpop.f32.mrb[0].mxu0
  %v616 = vadd.f32 %v463, %v615
  %v617 = vpop.f32.mrb[0].mxu0
  %618 = vmatprep.mubr.f32.mxu0 0.0
  %619 = vmatmul.mubr.f32.gmra.mrb[0].mxu0 %v79
  %v620 = vpop.f32.mrb[0].mxu0
  %v621 = vadd.f32 %v465, %v620
  %v622 = vpop.f32.mrb[0].mxu0
  %623 = vmatprep.mubr.f32.mxu0 0.0
  %624 = vmatmul.mubr.f32.gmra.mrb[0].mxu0 %v80
  %v625 = vpop.f32.mrb[0].mxu0
  %v626 = vadd.f32 %v467, %v625
  %v627 = vpop.f32.mrb[0].mxu0
  %628 = vdwg.mxu0
  %v629 = vsub.f32 0.0, %v551
  %v630 = vsub.f32 0.0, %v556
  %v631 = vsub.f32 0.0, %v561
  %v632 = vsub.f32 0.0, %v566
  %v633 = vsub.f32 0.0, %v571
  %v634 = vsub.f32 0.0, %v576
  %v635 = vsub.f32 0.0, %v581
  %v636 = vsub.f32 0.0, %v586
  %v637 = vsub.f32 0.0, %v591
  %v638 = vsub.f32 0.0, %v596
  %v639 = vsub.f32 0.0, %v601
  %v640 = vsub.f32 0.0, %v606
  %v641 = vsub.f32 0.0, %v611
  %v642 = vsub.f32 0.0, %v616
  %v643 = vsub.f32 0.0, %v621
  %v644 = vsub.f32 0.0, %v626
  %v645 = vmul.f32 %v629, 1.442695
  %v646 = vpow.pop %v645
  %v647 = vmul.f32 %v630, 1.442695
  %v648 = vpow.pop %v647
  %v649 = vmul.f32 %v631, 1.442695
  %v650 = vpow.pop %v649
  %v651 = vmul.f32 %v632, 1.442695
  %v652 = vpow.pop %v651
  %v653 = vmul.f32 %v633, 1.442695
  %v654 = vpow.pop %v653
  %v655 = vmul.f32 %v634, 1.442695
  %v656 = vpow.pop %v655
  %v657 = vmul.f32 %v635, 1.442695
  %v658 = vpow.pop %v657
  %v659 = vmul.f32 %v636, 1.442695
  %v660 = vpow.pop %v659
  %v661 = vmul.f32 %v637, 1.442695
  %v662 = vpow.pop %v661
  %v663 = vmul.f32 %v638, 1.442695
  %v664 = vpow.pop %v663
  %v665 = vmul.f32 %v639, 1.442695
  %v666 = vpow.pop %v665
  %v667 = vmul.f32 %v640, 1.442695
  %v668 = vpow.pop %v667
  %v669 = vmul.f32 %v641, 1.442695
  %v670 = vpow.pop %v669
  %v671 = vmul.f32 %v642, 1.442695
  %v672 = vpow.pop %v671
  %v673 = vmul.f32 %v643, 1.442695
  %v674 = vpow.pop %v673
  %v675 = vmul.f32 %v644, 1.442695
  %v676 = vpow.pop %v675
  %v677 = vadd.f32 %v646, 1.0
  %v678 = vadd.f32 %v648, 1.0
  %v679 = vadd.f32 %v650, 1.0
  %v680 = vadd.f32 %v652, 1.0
  %v681 = vadd.f32 %v654, 1.0
  %v682 = vadd.f32 %v656, 1.0
  %v683 = vadd.f32 %v658, 1.0
  %v684 = vadd.f32 %v660, 1.0
  %v685 = vadd.f32 %v662, 1.0
  %v686 = vadd.f32 %v664, 1.0
  %v687 = vadd.f32 %v666, 1.0
  %v688 = vadd.f32 %v668, 1.0
  %v689 = vadd.f32 %v670, 1.0
  %v690 = vadd.f32 %v672, 1.0
  %v691 = vadd.f32 %v674, 1.0
  %v692 = vadd.f32 %v676, 1.0
  %v693 = vrcp.pop %v677
  %v694 = vmul.f32 1.0, %v693
  %v695 = vrcp.pop %v678
  %v696 = vmul.f32 1.0, %v695
  %v697 = vrcp.pop %v679
  %v698 = vmul.f32 1.0, %v697
  %v699 = vrcp.pop %v680
  %v700 = vmul.f32 1.0, %v699
  %v701 = vrcp.pop %v681
  %v702 = vmul.f32 1.0, %v701
  %v703 = vrcp.pop %v682
  %v704 = vmul.f32 1.0, %v703
  %v705 = vrcp.pop %v683
  %v706 = vmul.f32 1.0, %v705
  %v707 = vrcp.pop %v684
  %v708 = vmul.f32 1.0, %v707
  %v709 = vrcp.pop %v685
  %v710 = vmul.f32 1.0, %v709
  %v711 = vrcp.pop %v686
  %v712 = vmul.f32 1.0, %v711
  %v713 = vrcp.pop %v687
  %v714 = vmul.f32 1.0, %v713
  %v715 = vrcp.pop %v688
  %v716 = vmul.f32 1.0, %v715
  %v717 = vrcp.pop %v689
  %v718 = vmul.f32 1.0, %v717
  %v719 = vrcp.pop %v690
  %v720 = vmul.f32 1.0, %v719
  %v721 = vrcp.pop %v691
  %v722 = vmul.f32 1.0, %v721
  %v723 = vrcp.pop %v692
  %v724 = vmul.f32 1.0, %v723
  %725 = vmatprep.subr.mxu0 %v83
  %726 = vmatpush1.msra.mxu0 %v82
  %727 = vmatprep.subr.mxu0 %v85
  %728 = vmatpush1.msra.mxu0 %v84
  %729 = vmatprep.subr.mxu0 %v87
  %730 = vmatpush1.msra.mxu0 %v86
  %731 = vmatprep.subr.mxu0 %v89
  %732 = vmatpush1.msra.mxu0 %v88
  %733 = vmatprep.subr.mxu0 %v91
  %734 = vmatpush1.msra.mxu0 %v90
  %735 = vmatprep.subr.mxu0 %v93
  %736 = vmatpush1.msra.mxu0 %v92
  %737 = vmatprep.subr.mxu0 %v95
  %738 = vmatpush1.msra.mxu0 %v94
  %739 = vmatprep.subr.mxu0 %v97
  %740 = vmatpush1.msra.mxu0 %v96
  %741 = vmatprep.subr.mxu0 %v99
  %742 = vmatpush1.msra.mxu0 %v98
  %743 = vmatprep.subr.mxu0 %v101
  %744 = vmatpush1.msra.mxu0 %v100
  %745 = vmatprep.subr.mxu0 %v103
  %746 = vmatpush1.msra.mxu0 %v102
  %747 = vmatprep.subr.mxu0 %v105
  %748 = vmatpush1.msra.mxu0 %v104
  %749 = vmatprep.subr.mxu0 %v107
  %750 = vmatpush1.msra.mxu0 %v106
  %751 = vmatprep.subr.mxu0 %v109
  %752 = vmatpush1.msra.mxu0 %v108
  %753 = vmatprep.subr.mxu0 %v111
  %754 = vmatpush1.msra.mxu0 %v110
  %755 = vmatprep.subr.mxu0 %v113
  %756 = vmatpush1.msra.mxu0 %v112
  %757 = vmatprep.subr.mxu0 0.0
  %758 = vmatpush1.msra.mxu0 0.0
  %759 = vmatprep.subr.mxu0 0.0
  %760 = vmatpush1.msra.mxu0 0.0
  %761 = vmatprep.subr.mxu0 0.0
  %762 = vmatpush1.msra.mxu0 0.0
  %763 = vmatprep.subr.mxu0 0.0
  %764 = vmatpush1.msra.mxu0 0.0
  %765 = vmatprep.subr.mxu0 0.0
  %766 = vmatpush1.msra.mxu0 0.0
  %767 = vmatprep.subr.mxu0 0.0
  %768 = vmatpush1.msra.mxu0 0.0
  %769 = vmatprep.subr.mxu0 0.0
  %770 = vmatpush1.msra.mxu0 0.0
  %771 = vmatprep.subr.mxu0 0.0
  %772 = vmatpush1.msra.mxu0 0.0
  %773 = vmatprep.subr.mxu0 0.0
  %774 = vmatpush1.msra.mxu0 0.0
  %775 = vmatprep.subr.mxu0 0.0
  %776 = vmatpush1.msra.mxu0 0.0
  %777 = vmatprep.subr.mxu0 0.0
  %778 = vmatpush1.msra.mxu0 0.0
  %779 = vmatprep.subr.mxu0 0.0
  %780 = vmatpush1.msra.mxu0 0.0
  %781 = vmatprep.subr.mxu0 0.0
  %782 = vmatpush1.msra.mxu0 0.0
  %783 = vmatprep.subr.mxu0 0.0
  %784 = vmatpush1.msra.mxu0 0.0
  %785 = vmatprep.subr.mxu0 0.0
  %786 = vmatpush1.msra.mxu0 0.0
  %787 = vmatprep.subr.mxu0 0.0
  %788 = vmatpush1.msra.mxu0 0.0
  %789 = vmatprep.mubr.f32.mxu0 0.0
  %790 = vmatmul.mubr.f32.gmra.mrb[0].mxu0 %v81
  %v791 = vpop.f32.mrb[0].mxu0
  %v792 = vadd.f32 0.0, %v791
  %v793 = vpop.f32.mrb[0].mxu0
  %v794 = vadd.f32 0.0, %v793
  %795 = vdwg.mxu0
  %v796 = vsub.f32 0.0, %v792
  %v797 = vsub.f32 0.0, %v794
  %v798 = vmul.f32 %v796, 1.442695
  %v799 = vpow.pop %v798
  %v800 = vmul.f32 %v797, 1.442695
  %v801 = vpow.pop %v800
  %v802 = vadd.f32 %v799, 1.0
  %v803 = vadd.f32 %v801, 1.0
  %v804 = vrcp.pop %v802
  %v805 = vmul.f32 1.0, %v804
  %v806 = vrcp.pop %v803
  %v807 = vmul.f32 1.0, %v806
  %v808 = vadd.f32 %v694, 1.0
  %v809 = vadd.f32 %v696, 1.0
  %v810 = vadd.f32 %v698, 1.0
  %v811 = vadd.f32 %v700, 1.0
  %v812 = vadd.f32 %v702, 1.0
  %v813 = vadd.f32 %v704, 1.0
  %v814 = vadd.f32 %v706, 1.0
  %v815 = vadd.f32 %v708, 1.0
  %v816 = vadd.f32 %v710, 1.0
  %v817 = vadd.f32 %v712, 1.0
  %v818 = vadd.f32 %v714, 1.0
  %v819 = vadd.f32 %v716, 1.0
  %v820 = vadd.f32 %v718, 1.0
  %v821 = vadd.f32 %v720, 1.0
  %v822 = vadd.f32 %v722, 1.0
  %v823 = vadd.f32 %v724, 1.0
  %825 = vset.pattern.permute.xlu0 0
  %826 = vperm.xlu0 %825, %v808
  %v827 = vpop.permute.xlu0 %826
  %830 = vset.pattern.permute.xlu0 0
  %831 = vperm.xlu0 %830, %v809
  %v832 = vpop.permute.xlu0 %831
  %835 = vset.pattern.permute.xlu0 0
  %836 = vperm.xlu0 %835, %v810
  %v837 = vpop.permute.xlu0 %836
  %840 = vset.pattern.permute.xlu0 0
  %841 = vperm.xlu0 %840, %v811
  %v842 = vpop.permute.xlu0 %841
  %845 = vset.pattern.permute.xlu0 0
  %846 = vperm.xlu0 %845, %v812
  %v847 = vpop.permute.xlu0 %846
  %850 = vset.pattern.permute.xlu0 0
  %851 = vperm.xlu0 %850, %v813
  %v852 = vpop.permute.xlu0 %851
  %855 = vset.pattern.permute.xlu0 0
  %856 = vperm.xlu0 %855, %v814
  %v857 = vpop.permute.xlu0 %856
  %860 = vset.pattern.permute.xlu0 0
  %861 = vperm.xlu0 %860, %v815
  %v862 = vpop.permute.xlu0 %861
  %865 = vset.pattern.permute.xlu0 0
  %866 = vperm.xlu0 %865, %v816
  %v867 = vpop.permute.xlu0 %866
  %870 = vset.pattern.permute.xlu0 0
  %871 = vperm.xlu0 %870, %v817
  %v872 = vpop.permute.xlu0 %871
  %875 = vset.pattern.permute.xlu0 0
  %876 = vperm.xlu0 %875, %v818
  %v877 = vpop.permute.xlu0 %876
  %880 = vset.pattern.permute.xlu0 0
  %881 = vperm.xlu0 %880, %v819
  %v882 = vpop.permute.xlu0 %881
  %885 = vset.pattern.permute.xlu0 0
  %886 = vperm.xlu0 %885, %v820
  %v887 = vpop.permute.xlu0 %886
  %890 = vset.pattern.permute.xlu0 0
  %891 = vperm.xlu0 %890, %v821
  %v892 = vpop.permute.xlu0 %891
  %895 = vset.pattern.permute.xlu0 0
  %896 = vperm.xlu0 %895, %v822
  %v897 = vpop.permute.xlu0 %896
  %900 = vset.pattern.permute.xlu0 0
  %901 = vperm.xlu0 %900, %v823
  %v902 = vpop.permute.xlu0 %901
  %v904 = vlaneseq
  %v905 = vshrl.u32 %v904, 7
  %v906 = vsub.s32 0, %v905
  %v907 = vrot.slane %v805, %v906
  %v908 = vlaneseq
  %v909 = vshrl.u32 %v908, 7
  %v910 = vsub.s32 0, %v909
  %v911 = vrot.slane %v807, %v910
  %v912 = vadd.f32 %v827, %v907
  %v913 = vadd.f32 %v827, %v911
  %v914 = vadd.f32 %v832, %v907
  %v915 = vadd.f32 %v832, %v911
  %v916 = vadd.f32 %v837, %v907
  %v917 = vadd.f32 %v837, %v911
  %v918 = vadd.f32 %v842, %v907
  %v919 = vadd.f32 %v842, %v911
  %v920 = vadd.f32 %v847, %v907
  %v921 = vadd.f32 %v847, %v911
  %v922 = vadd.f32 %v852, %v907
  %v923 = vadd.f32 %v852, %v911
  %v924 = vadd.f32 %v857, %v907
  %v925 = vadd.f32 %v857, %v911
  %v926 = vadd.f32 %v862, %v907
  %v927 = vadd.f32 %v862, %v911
  %v928 = vadd.f32 %v867, %v907
  %v929 = vadd.f32 %v867, %v911
  %v930 = vadd.f32 %v872, %v907
  %v931 = vadd.f32 %v872, %v911
  %v932 = vadd.f32 %v877, %v907
  %v933 = vadd.f32 %v877, %v911
  %v934 = vadd.f32 %v882, %v907
  %v935 = vadd.f32 %v882, %v911
  %v936 = vadd.f32 %v887, %v907
  %v937 = vadd.f32 %v887, %v911
  %v938 = vadd.f32 %v892, %v907
  %v939 = vadd.f32 %v892, %v911
  %v940 = vadd.f32 %v897, %v907
  %v941 = vadd.f32 %v897, %v911
  %v942 = vadd.f32 %v902, %v907
  %v943 = vadd.f32 %v902, %v911
  %v944 = vmul.f32 %v82, %v912
  %v945 = vmul.f32 %v83, %v913
  %v946 = vmul.f32 %v84, %v914
  %v947 = vmul.f32 %v85, %v915
  %v948 = vmul.f32 %v86, %v916
  %v949 = vmul.f32 %v87, %v917
  %v950 = vmul.f32 %v88, %v918
  %v951 = vmul.f32 %v89, %v919
  %v952 = vmul.f32 %v90, %v920
  %v953 = vmul.f32 %v91, %v921
  %v954 = vmul.f32 %v92, %v922
  %v955 = vmul.f32 %v93, %v923
  %v956 = vmul.f32 %v94, %v924
  %v957 = vmul.f32 %v95, %v925
  %v958 = vmul.f32 %v96, %v926
  %v959 = vmul.f32 %v97, %v927
  %v960 = vmul.f32 %v98, %v928
  %v961 = vmul.f32 %v99, %v929
  %v962 = vmul.f32 %v100, %v930
  %v963 = vmul.f32 %v101, %v931
  %v964 = vmul.f32 %v102, %v932
  %v965 = vmul.f32 %v103, %v933
  %v966 = vmul.f32 %v104, %v934
  %v967 = vmul.f32 %v105, %v935
  %v968 = vmul.f32 %v106, %v936
  %v969 = vmul.f32 %v107, %v937
  %v970 = vmul.f32 %v108, %v938
  %v971 = vmul.f32 %v109, %v939
  %v972 = vmul.f32 %v110, %v940
  %v973 = vmul.f32 %v111, %v941
  %v974 = vmul.f32 %v112, %v942
  %v975 = vmul.f32 %v113, %v943
  %976 = vst [vmem:[%s4] sm:$0xff] %v944
  %977 = vst [vmem:[%s4 + $0x8] sm:$0xff] %v945
  %978 = vst [vmem:[%s4 + $0x10] sm:$0xff] %v946
  %979 = vst [vmem:[%s4 + $0x18] sm:$0xff] %v947
  %980 = vst [vmem:[%s4 + $0x20] sm:$0xff] %v948
  %981 = vst [vmem:[%s4 + $0x28] sm:$0xff] %v949
  %982 = vst [vmem:[%s4 + $0x30] sm:$0xff] %v950
  %983 = vst [vmem:[%s4 + $0x38] sm:$0xff] %v951
  %984 = vst [vmem:[%s4 + $0x40] sm:$0xff] %v952
  %985 = vst [vmem:[%s4 + $0x48] sm:$0xff] %v953
  %986 = vst [vmem:[%s4 + $0x50] sm:$0xff] %v954
  %987 = vst [vmem:[%s4 + $0x58] sm:$0xff] %v955
  %988 = vst [vmem:[%s4 + $0x60] sm:$0xff] %v956
  %989 = vst [vmem:[%s4 + $0x68] sm:$0xff] %v957
  %990 = vst [vmem:[%s4 + $0x70] sm:$0xff] %v958
  %991 = vst [vmem:[%s4 + $0x78] sm:$0xff] %v959
  %992 = vst [vmem:[%s4 + $0x80] sm:$0xff] %v960
  %993 = vst [vmem:[%s4 + $0x88] sm:$0xff] %v961
  %994 = vst [vmem:[%s4 + $0x90] sm:$0xff] %v962
  %995 = vst [vmem:[%s4 + $0x98] sm:$0xff] %v963
  %996 = vst [vmem:[%s4 + $0xa0] sm:$0xff] %v964
  %997 = vst [vmem:[%s4 + $0xa8] sm:$0xff] %v965
  %998 = vst [vmem:[%s4 + $0xb0] sm:$0xff] %v966
  %999 = vst [vmem:[%s4 + $0xb8] sm:$0xff] %v967
  %1000 = vst [vmem:[%s4 + $0xc0] sm:$0xff] %v968
  %1001 = vst [vmem:[%s4 + $0xc8] sm:$0xff] %v969
  %1002 = vst [vmem:[%s4 + $0xd0] sm:$0xff] %v970
  %1003 = vst [vmem:[%s4 + $0xd8] sm:$0xff] %v971
  %1004 = vst [vmem:[%s4 + $0xe0] sm:$0xff] %v972
  %1005 = vst [vmem:[%s4 + $0xe8] sm:$0xff] %v973
  %1006 = vst [vmem:[%s4 + $0xf0] sm:$0xff] %v974
  %1007 = vst [vmem:[%s4 + $0xf8] sm:$0xff] %v975
  %s1008 = scalar_lea.vmem %s0, 256
  %v1009 = vld [vmem:[%s1008] sm:$0xff]
  %v1010 = vld [vmem:[%s1008 + $0x8] sm:$0xff]
  %v1011 = vld [vmem:[%s1008 + $0x10] sm:$0xff]
  %v1012 = vld [vmem:[%s1008 + $0x18] sm:$0xff]
  %v1013 = vld [vmem:[%s1008 + $0x20] sm:$0xff]
  %v1014 = vld [vmem:[%s1008 + $0x28] sm:$0xff]
  %v1015 = vld [vmem:[%s1008 + $0x30] sm:$0xff]
  %v1016 = vld [vmem:[%s1008 + $0x38] sm:$0xff]
  %v1017 = vld [vmem:[%s1008 + $0x40] sm:$0xff]
  %v1018 = vld [vmem:[%s1008 + $0x48] sm:$0xff]
  %v1019 = vld [vmem:[%s1008 + $0x50] sm:$0xff]
  %v1020 = vld [vmem:[%s1008 + $0x58] sm:$0xff]
  %v1021 = vld [vmem:[%s1008 + $0x60] sm:$0xff]
  %v1022 = vld [vmem:[%s1008 + $0x68] sm:$0xff]
  %v1023 = vld [vmem:[%s1008 + $0x70] sm:$0xff]
  %v1024 = vld [vmem:[%s1008 + $0x78] sm:$0xff]
  %v1025 = vld [vmem:[%s1008 + $0x80] sm:$0xff]
  %v1026 = vld [vmem:[%s1008 + $0x88] sm:$0xff]
  %v1027 = vld [vmem:[%s1008 + $0x90] sm:$0xff]
  %v1028 = vld [vmem:[%s1008 + $0x98] sm:$0xff]
  %v1029 = vld [vmem:[%s1008 + $0xa0] sm:$0xff]
  %v1030 = vld [vmem:[%s1008 + $0xa8] sm:$0xff]
  %v1031 = vld [vmem:[%s1008 + $0xb0] sm:$0xff]
  %v1032 = vld [vmem:[%s1008 + $0xb8] sm:$0xff]
  %v1033 = vld [vmem:[%s1008 + $0xc0] sm:$0xff]
  %v1034 = vld [vmem:[%s1008 + $0xc8] sm:$0xff]
  %v1035 = vld [vmem:[%s1008 + $0xd0] sm:$0xff]
  %v1036 = vld [vmem:[%s1008 + $0xd8] sm:$0xff]
  %v1037 = vld [vmem:[%s1008 + $0xe0] sm:$0xff]
  %v1038 = vld [vmem:[%s1008 + $0xe8] sm:$0xff]
  %v1039 = vld [vmem:[%s1008 + $0xf0] sm:$0xff]
  %v1040 = vld [vmem:[%s1008 + $0xf8] sm:$0xff]
  %1041 = vmatprep.subr.mxu0 0.0
  %1042 = vmatpush1.msra.mxu0 %v17
  %1043 = vmatprep.subr.mxu0 0.0
  %1044 = vmatpush1.msra.mxu0 %v18
  %1045 = vmatprep.subr.mxu0 0.0
  %1046 = vmatpush1.msra.mxu0 %v19
  %1047 = vmatprep.subr.mxu0 0.0
  %1048 = vmatpush1.msra.mxu0 %v20
  %1049 = vmatprep.subr.mxu0 0.0
  %1050 = vmatpush1.msra.mxu0 %v21
  %1051 = vmatprep.subr.mxu0 0.0
  %1052 = vmatpush1.msra.mxu0 %v22
  %1053 = vmatprep.subr.mxu0 0.0
  %1054 = vmatpush1.msra.mxu0 %v23
  %1055 = vmatprep.subr.mxu0 0.0
  %1056 = vmatpush1.msra.mxu0 %v24
  %1057 = vmatprep.subr.mxu0 0.0
  %1058 = vmatpush1.msra.mxu0 %v25
  %1059 = vmatprep.subr.mxu0 0.0
  %1060 = vmatpush1.msra.mxu0 %v26
  %1061 = vmatprep.subr.mxu0 0.0
  %1062 = vmatpush1.msra.mxu0 %v27
  %1063 = vmatprep.subr.mxu0 0.0
  %1064 = vmatpush1.msra.mxu0 %v28
  %1065 = vmatprep.subr.mxu0 0.0
  %1066 = vmatpush1.msra.mxu0 %v29
  %1067 = vmatprep.subr.mxu0 0.0
  %1068 = vmatpush1.msra.mxu0 %v30
  %1069 = vmatprep.subr.mxu0 0.0
  %1070 = vmatpush1.msra.mxu0 %v31
  %1071 = vmatprep.subr.mxu0 0.0
  %1072 = vmatpush1.msra.mxu0 %v32
  %1073 = vmatprep.subr.mxu0 0.0
  %1074 = vmatpush1.msra.mxu0 %v33
  %1075 = vmatprep.subr.mxu0 0.0
  %1076 = vmatpush1.msra.mxu0 %v34
  %1077 = vmatprep.subr.mxu0 0.0
  %1078 = vmatpush1.msra.mxu0 %v35
  %1079 = vmatprep.subr.mxu0 0.0
  %1080 = vmatpush1.msra.mxu0 %v36
  %1081 = vmatprep.subr.mxu0 0.0
  %1082 = vmatpush1.msra.mxu0 %v37
  %1083 = vmatprep.subr.mxu0 0.0
  %1084 = vmatpush1.msra.mxu0 %v38
  %1085 = vmatprep.subr.mxu0 0.0
  %1086 = vmatpush1.msra.mxu0 %v39
  %1087 = vmatprep.subr.mxu0 0.0
  %1088 = vmatpush1.msra.mxu0 %v40
  %1089 = vmatprep.subr.mxu0 0.0
  %1090 = vmatpush1.msra.mxu0 %v41
  %1091 = vmatprep.subr.mxu0 0.0
  %1092 = vmatpush1.msra.mxu0 %v42
  %1093 = vmatprep.subr.mxu0 0.0
  %1094 = vmatpush1.msra.mxu0 %v43
  %1095 = vmatprep.subr.mxu0 0.0
  %1096 = vmatpush1.msra.mxu0 %v44
  %1097 = vmatprep.subr.mxu0 0.0
  %1098 = vmatpush1.msra.mxu0 %v45
  %1099 = vmatprep.subr.mxu0 0.0
  %1100 = vmatpush1.msra.mxu0 %v46
  %1101 = vmatprep.subr.mxu0 0.0
  %1102 = vmatpush1.msra.mxu0 %v47
  %1103 = vmatprep.subr.mxu0 0.0
  %1104 = vmatpush1.msra.mxu0 %v48
  %1105 = vmatprep.mubr.f32.mxu0 %v1010
  %1106 = vmatmul.mubr.f32.gmra.mrb[0].mxu0 %v1009
  %v1107 = vpop.f32.mrb[0].mxu0
  %v1108 = vadd.f32 0.0, %v1107
  %v1109 = vpop.f32.mrb[0].mxu0
  %1110 = vmatprep.mubr.f32.mxu0 %v1012
  %1111 = vmatmul.mubr.f32.gmra.mrb[0].mxu0 %v1011
  %v1112 = vpop.f32.mrb[0].mxu0
  %v1113 = vadd.f32 0.0, %v1112
  %v1114 = vpop.f32.mrb[0].mxu0
  %1115 = vmatprep.mubr.f32.mxu0 %v1014
  %1116 = vmatmul.mubr.f32.gmra.mrb[0].mxu0 %v1013
  %v1117 = vpop.f32.mrb[0].mxu0
  %v1118 = vadd.f32 0.0, %v1117
  %v1119 = vpop.f32.mrb[0].mxu0
  %1120 = vmatprep.mubr.f32.mxu0 %v1016
  %1121 = vmatmul.mubr.f32.gmra.mrb[0].mxu0 %v1015
  %v1122 = vpop.f32.mrb[0].mxu0
  %v1123 = vadd.f32 0.0, %v1122
  %v1124 = vpop.f32.mrb[0].mxu0
  %1125 = vmatprep.mubr.f32.mxu0 %v1018
  %1126 = vmatmul.mubr.f32.gmra.mrb[0].mxu0 %v1017
  %v1127 = vpop.f32.mrb[0].mxu0
  %v1128 = vadd.f32 0.0, %v1127
  %v1129 = vpop.f32.mrb[0].mxu0
  %1130 = vmatprep.mubr.f32.mxu0 %v1020
  %1131 = vmatmul.mubr.f32.gmra.mrb[0].mxu0 %v1019
  %v1132 = vpop.f32.mrb[0].mxu0
  %v1133 = vadd.f32 0.0, %v1132
  %v1134 = vpop.f32.mrb[0].mxu0
  %1135 = vmatprep.mubr.f32.mxu0 %v1022
  %1136 = vmatmul.mubr.f32.gmra.mrb[0].mxu0 %v1021
  %v1137 = vpop.f32.mrb[0].mxu0
  %v1138 = vadd.f32 0.0, %v1137
  %v1139 = vpop.f32.mrb[0].mxu0
  %1140 = vmatprep.mubr.f32.mxu0 %v1024
  %1141 = vmatmul.mubr.f32.gmra.mrb[0].mxu0 %v1023
  %v1142 = vpop.f32.mrb[0].mxu0
  %v1143 = vadd.f32 0.0, %v1142
  %v1144 = vpop.f32.mrb[0].mxu0
  %1145 = vmatprep.mubr.f32.mxu0 %v1026
  %1146 = vmatmul.mubr.f32.gmra.mrb[0].mxu0 %v1025
  %v1147 = vpop.f32.mrb[0].mxu0
  %v1148 = vadd.f32 0.0, %v1147
  %v1149 = vpop.f32.mrb[0].mxu0
  %1150 = vmatprep.mubr.f32.mxu0 %v1028
  %1151 = vmatmul.mubr.f32.gmra.mrb[0].mxu0 %v1027
  %v1152 = vpop.f32.mrb[0].mxu0
  %v1153 = vadd.f32 0.0, %v1152
  %v1154 = vpop.f32.mrb[0].mxu0
  %1155 = vmatprep.mubr.f32.mxu0 %v1030
  %1156 = vmatmul.mubr.f32.gmra.mrb[0].mxu0 %v1029
  %v1157 = vpop.f32.mrb[0].mxu0
  %v1158 = vadd.f32 0.0, %v1157
  %v1159 = vpop.f32.mrb[0].mxu0
  %1160 = vmatprep.mubr.f32.mxu0 %v1032
  %1161 = vmatmul.mubr.f32.gmra.mrb[0].mxu0 %v1031
  %v1162 = vpop.f32.mrb[0].mxu0
  %v1163 = vadd.f32 0.0, %v1162
  %v1164 = vpop.f32.mrb[0].mxu0
  %1165 = vmatprep.mubr.f32.mxu0 %v1034
  %1166 = vmatmul.mubr.f32.gmra.mrb[0].mxu0 %v1033
  %v1167 = vpop.f32.mrb[0].mxu0
  %v1168 = vadd.f32 0.0, %v1167
  %v1169 = vpop.f32.mrb[0].mxu0
  %1170 = vmatprep.mubr.f32.mxu0 %v1036
  %1171 = vmatmul.mubr.f32.gmra.mrb[0].mxu0 %v1035
  %v1172 = vpop.f32.mrb[0].mxu0
  %v1173 = vadd.f32 0.0, %v1172
  %v1174 = vpop.f32.mrb[0].mxu0
  %1175 = vmatprep.mubr.f32.mxu0 %v1038
  %1176 = vmatmul.mubr.f32.gmra.mrb[0].mxu0 %v1037
  %v1177 = vpop.f32.mrb[0].mxu0
  %v1178 = vadd.f32 0.0, %v1177
  %v1179 = vpop.f32.mrb[0].mxu0
  %1180 = vmatprep.mubr.f32.mxu0 %v1040
  %1181 = vmatmul.mubr.f32.gmra.mrb[0].mxu0 %v1039
  %v1182 = vpop.f32.mrb[0].mxu0
  %v1183 = vadd.f32 0.0, %v1182
  %v1184 = vpop.f32.mrb[0].mxu0
  %1185 = vdwg.mxu0
  %v1186 = vmul.f32 %v1108, %v49
  %v1187 = vmul.f32 %v1113, %v50
  %v1188 = vmul.f32 %v1118, %v51
  %v1189 = vmul.f32 %v1123, %v52
  %v1190 = vmul.f32 %v1128, %v53
  %v1191 = vmul.f32 %v1133, %v54
  %v1192 = vmul.f32 %v1138, %v55
  %v1193 = vmul.f32 %v1143, %v56
  %v1194 = vmul.f32 %v1148, %v57
  %v1195 = vmul.f32 %v1153, %v58
  %v1196 = vmul.f32 %v1158, %v59
  %v1197 = vmul.f32 %v1163, %v60
  %v1198 = vmul.f32 %v1168, %v61
  %v1199 = vmul.f32 %v1173, %v62
  %v1200 = vmul.f32 %v1178, %v63
  %v1201 = vmul.f32 %v1183, %v64
  %v1202 = vsel %vm275, %v1186, 0.0
  %1203 = vadd.xlane.f32.xlu0 %v1202
  %v1204 = vpop.xlane.xlu0 %1203
  %v1205 = vsel %vm275, %v1187, 0.0
  %1206 = vadd.xlane.f32.xlu0 %v1205
  %v1207 = vpop.xlane.xlu0 %1206
  %v1208 = vsel %vm275, %v1188, 0.0
  %1209 = vadd.xlane.f32.xlu0 %v1208
  %v1210 = vpop.xlane.xlu0 %1209
  %v1211 = vsel %vm275, %v1189, 0.0
  %1212 = vadd.xlane.f32.xlu0 %v1211
  %v1213 = vpop.xlane.xlu0 %1212
  %v1214 = vsel %vm275, %v1190, 0.0
  %1215 = vadd.xlane.f32.xlu0 %v1214
  %v1216 = vpop.xlane.xlu0 %1215
  %v1217 = vsel %vm275, %v1191, 0.0
  %1218 = vadd.xlane.f32.xlu0 %v1217
  %v1219 = vpop.xlane.xlu0 %1218
  %v1220 = vsel %vm275, %v1192, 0.0
  %1221 = vadd.xlane.f32.xlu0 %v1220
  %v1222 = vpop.xlane.xlu0 %1221
  %v1223 = vsel %vm275, %v1193, 0.0
  %1224 = vadd.xlane.f32.xlu0 %v1223
  %v1225 = vpop.xlane.xlu0 %1224
  %v1226 = vsel %vm275, %v1194, 0.0
  %1227 = vadd.xlane.f32.xlu0 %v1226
  %v1228 = vpop.xlane.xlu0 %1227
  %v1229 = vsel %vm275, %v1195, 0.0
  %1230 = vadd.xlane.f32.xlu0 %v1229
  %v1231 = vpop.xlane.xlu0 %1230
  %v1232 = vsel %vm275, %v1196, 0.0
  %1233 = vadd.xlane.f32.xlu0 %v1232
  %v1234 = vpop.xlane.xlu0 %1233
  %v1235 = vsel %vm275, %v1197, 0.0
  %1236 = vadd.xlane.f32.xlu0 %v1235
  %v1237 = vpop.xlane.xlu0 %1236
  %v1238 = vsel %vm275, %v1198, 0.0
  %1239 = vadd.xlane.f32.xlu0 %v1238
  %v1240 = vpop.xlane.xlu0 %1239
  %v1241 = vsel %vm275, %v1199, 0.0
  %1242 = vadd.xlane.f32.xlu0 %v1241
  %v1243 = vpop.xlane.xlu0 %1242
  %v1244 = vsel %vm275, %v1200, 0.0
  %1245 = vadd.xlane.f32.xlu0 %v1244
  %v1246 = vpop.xlane.xlu0 %1245
  %v1247 = vsel %vm275, %v1201, 0.0
  %1248 = vadd.xlane.f32.xlu0 %v1247
  %v1249 = vpop.xlane.xlu0 %1248
  %v1250 = vadd.f32 %v1204, %v49
  %v1251 = vadd.f32 %v1207, %v50
  %v1252 = vadd.f32 %v1210, %v51
  %v1253 = vadd.f32 %v1213, %v52
  %v1254 = vadd.f32 %v1216, %v53
  %v1255 = vadd.f32 %v1219, %v54
  %v1256 = vadd.f32 %v1222, %v55
  %v1257 = vadd.f32 %v1225, %v56
  %v1258 = vadd.f32 %v1228, %v57
  %v1259 = vadd.f32 %v1231, %v58
  %v1260 = vadd.f32 %v1234, %v59
  %v1261 = vadd.f32 %v1237, %v60
  %v1262 = vadd.f32 %v1240, %v61
  %v1263 = vadd.f32 %v1243, %v62
  %v1264 = vadd.f32 %v1246, %v63
  %v1265 = vadd.f32 %v1249, %v64
  %v1266 = vmax.f32 %v1250, 0.0
  %v1267 = vmax.f32 %v1251, 0.0
  %v1268 = vmax.f32 %v1252, 0.0
  %v1269 = vmax.f32 %v1253, 0.0
  %v1270 = vmax.f32 %v1254, 0.0
  %v1271 = vmax.f32 %v1255, 0.0
  %v1272 = vmax.f32 %v1256, 0.0
  %v1273 = vmax.f32 %v1257, 0.0
  %v1274 = vmax.f32 %v1258, 0.0
  %v1275 = vmax.f32 %v1259, 0.0
  %v1276 = vmax.f32 %v1260, 0.0
  %v1277 = vmax.f32 %v1261, 0.0
  %v1278 = vmax.f32 %v1262, 0.0
  %v1279 = vmax.f32 %v1263, 0.0
  %v1280 = vmax.f32 %v1264, 0.0
  %v1281 = vmax.f32 %v1265, 0.0
  %1298 = vrot.lane.b32.xlu0 %v1266, 119
  %v1299 = vpop.permute.xlu0 %1298
  %1300 = vrot.lane.b32.xlu0 %v1267, 119
  %v1301 = vpop.permute.xlu0 %1300
  %1302 = vrot.lane.b32.xlu0 %v1268, 119
  %v1303 = vpop.permute.xlu0 %1302
  %1304 = vrot.lane.b32.xlu0 %v1269, 119
  %v1305 = vpop.permute.xlu0 %1304
  %1306 = vrot.lane.b32.xlu0 %v1270, 119
  %v1307 = vpop.permute.xlu0 %1306
  %1308 = vrot.lane.b32.xlu0 %v1271, 119
  %v1309 = vpop.permute.xlu0 %1308
  %1310 = vrot.lane.b32.xlu0 %v1272, 119
  %v1311 = vpop.permute.xlu0 %1310
  %1312 = vrot.lane.b32.xlu0 %v1273, 119
  %v1313 = vpop.permute.xlu0 %1312
  %1314 = vrot.lane.b32.xlu0 %v1274, 119
  %v1315 = vpop.permute.xlu0 %1314
  %1316 = vrot.lane.b32.xlu0 %v1275, 119
  %v1317 = vpop.permute.xlu0 %1316
  %1318 = vrot.lane.b32.xlu0 %v1276, 119
  %v1319 = vpop.permute.xlu0 %1318
  %1320 = vrot.lane.b32.xlu0 %v1277, 119
  %v1321 = vpop.permute.xlu0 %1320
  %1322 = vrot.lane.b32.xlu0 %v1278, 119
  %v1323 = vpop.permute.xlu0 %1322
  %1324 = vrot.lane.b32.xlu0 %v1279, 119
  %v1325 = vpop.permute.xlu0 %1324
  %1326 = vrot.lane.b32.xlu0 %v1280, 119
  %v1327 = vpop.permute.xlu0 %1326
  %1328 = vrot.lane.b32.xlu0 %v1281, 119
  %v1329 = vpop.permute.xlu0 %1328
  %1346 = vmatprep.subr.mxu0 0.0
  %1347 = vmatpush1.msra.mxu0 %v1299
  %1348 = vmatprep.subr.mxu0 0.0
  %1349 = vmatpush1.msra.mxu0 %v1301
  %1350 = vmatprep.subr.mxu0 0.0
  %1351 = vmatpush1.msra.mxu0 %v1303
  %1352 = vmatprep.subr.mxu0 0.0
  %1353 = vmatpush1.msra.mxu0 %v1305
  %1354 = vmatprep.subr.mxu0 0.0
  %1355 = vmatpush1.msra.mxu0 %v1307
  %1356 = vmatprep.subr.mxu0 0.0
  %1357 = vmatpush1.msra.mxu0 %v1309
  %1358 = vmatprep.subr.mxu0 0.0
  %1359 = vmatpush1.msra.mxu0 %v1311
  %1360 = vmatprep.subr.mxu0 0.0
  %1361 = vmatpush1.msra.mxu0 %v1313
  %1362 = vmatprep.subr.mxu0 0.0
  %1363 = vmatpush1.msra.mxu0 %v1315
  %1364 = vmatprep.subr.mxu0 0.0
  %1365 = vmatpush1.msra.mxu0 %v1317
  %1366 = vmatprep.subr.mxu0 0.0
  %1367 = vmatpush1.msra.mxu0 %v1319
  %1368 = vmatprep.subr.mxu0 0.0
  %1369 = vmatpush1.msra.mxu0 %v1321
  %1370 = vmatprep.subr.mxu0 0.0
  %1371 = vmatpush1.msra.mxu0 %v1323
  %1372 = vmatprep.subr.mxu0 0.0
  %1373 = vmatpush1.msra.mxu0 %v1325
  %1374 = vmatprep.subr.mxu0 0.0
  %1375 = vmatpush1.msra.mxu0 %v1327
  %1376 = vmatprep.subr.mxu0 0.0
  %1377 = vmatpush1.msra.mxu0 %v1329
  %1378 = vmatprep.subr.mxu0 0.0
  %1379 = vmatpush1.msra.mxu0 0.0
  %1380 = vmatprep.subr.mxu0 0.0
  %1381 = vmatpush1.msra.mxu0 0.0
  %1382 = vmatprep.subr.mxu0 0.0
  %1383 = vmatpush1.msra.mxu0 0.0
  %1384 = vmatprep.subr.mxu0 0.0
  %1385 = vmatpush1.msra.mxu0 0.0
  %1386 = vmatprep.subr.mxu0 0.0
  %1387 = vmatpush1.msra.mxu0 0.0
  %1388 = vmatprep.subr.mxu0 0.0
  %1389 = vmatpush1.msra.mxu0 0.0
  %1390 = vmatprep.subr.mxu0 0.0
  %1391 = vmatpush1.msra.mxu0 0.0
  %1392 = vmatprep.subr.mxu0 0.0
  %1393 = vmatpush1.msra.mxu0 0.0
  %1394 = vmatprep.subr.mxu0 0.0
  %1395 = vmatpush1.msra.mxu0 0.0
  %1396 = vmatprep.subr.mxu0 0.0
  %1397 = vmatpush1.msra.mxu0 0.0
  %1398 = vmatprep.subr.mxu0 0.0
  %1399 = vmatpush1.msra.mxu0 0.0
  %1400 = vmatprep.subr.mxu0 0.0
  %1401 = vmatpush1.msra.mxu0 0.0
  %1402 = vmatprep.subr.mxu0 0.0
  %1403 = vmatpush1.msra.mxu0 0.0
  %1404 = vmatprep.subr.mxu0 0.0
  %1405 = vmatpush1.msra.mxu0 0.0
  %1406 = vmatprep.subr.mxu0 0.0
  %1407 = vmatpush1.msra.mxu0 0.0
  %1408 = vmatprep.subr.mxu0 0.0
  %1409 = vmatpush1.msra.mxu0 0.0
  %1410 = vmatprep.mubr.f32.mxu0 0.0
  %1411 = vmatmul.mubr.f32.gmra.mrb[0].mxu0 %v65
  %v1412 = vpop.f32.mrb[0].mxu0
  %v1413 = vadd.f32 %v437, %v1412
  %v1414 = vpop.f32.mrb[0].mxu0
  %1415 = vmatprep.mubr.f32.mxu0 0.0
  %1416 = vmatmul.mubr.f32.gmra.mrb[0].mxu0 %v66
  %v1417 = vpop.f32.mrb[0].mxu0
  %v1418 = vadd.f32 %v439, %v1417
  %v1419 = vpop.f32.mrb[0].mxu0
  %1420 = vmatprep.mubr.f32.mxu0 0.0
  %1421 = vmatmul.mubr.f32.gmra.mrb[0].mxu0 %v67
  %v1422 = vpop.f32.mrb[0].mxu0
  %v1423 = vadd.f32 %v441, %v1422
  %v1424 = vpop.f32.mrb[0].mxu0
  %1425 = vmatprep.mubr.f32.mxu0 0.0
  %1426 = vmatmul.mubr.f32.gmra.mrb[0].mxu0 %v68
  %v1427 = vpop.f32.mrb[0].mxu0
  %v1428 = vadd.f32 %v443, %v1427
  %v1429 = vpop.f32.mrb[0].mxu0
  %1430 = vmatprep.mubr.f32.mxu0 0.0
  %1431 = vmatmul.mubr.f32.gmra.mrb[0].mxu0 %v69
  %v1432 = vpop.f32.mrb[0].mxu0
  %v1433 = vadd.f32 %v445, %v1432
  %v1434 = vpop.f32.mrb[0].mxu0
  %1435 = vmatprep.mubr.f32.mxu0 0.0
  %1436 = vmatmul.mubr.f32.gmra.mrb[0].mxu0 %v70
  %v1437 = vpop.f32.mrb[0].mxu0
  %v1438 = vadd.f32 %v447, %v1437
  %v1439 = vpop.f32.mrb[0].mxu0
  %1440 = vmatprep.mubr.f32.mxu0 0.0
  %1441 = vmatmul.mubr.f32.gmra.mrb[0].mxu0 %v71
  %v1442 = vpop.f32.mrb[0].mxu0
  %v1443 = vadd.f32 %v449, %v1442
  %v1444 = vpop.f32.mrb[0].mxu0
  %1445 = vmatprep.mubr.f32.mxu0 0.0
  %1446 = vmatmul.mubr.f32.gmra.mrb[0].mxu0 %v72
  %v1447 = vpop.f32.mrb[0].mxu0
  %v1448 = vadd.f32 %v451, %v1447
  %v1449 = vpop.f32.mrb[0].mxu0
  %1450 = vmatprep.mubr.f32.mxu0 0.0
  %1451 = vmatmul.mubr.f32.gmra.mrb[0].mxu0 %v73
  %v1452 = vpop.f32.mrb[0].mxu0
  %v1453 = vadd.f32 %v453, %v1452
  %v1454 = vpop.f32.mrb[0].mxu0
  %1455 = vmatprep.mubr.f32.mxu0 0.0
  %1456 = vmatmul.mubr.f32.gmra.mrb[0].mxu0 %v74
  %v1457 = vpop.f32.mrb[0].mxu0
  %v1458 = vadd.f32 %v455, %v1457
  %v1459 = vpop.f32.mrb[0].mxu0
  %1460 = vmatprep.mubr.f32.mxu0 0.0
  %1461 = vmatmul.mubr.f32.gmra.mrb[0].mxu0 %v75
  %v1462 = vpop.f32.mrb[0].mxu0
  %v1463 = vadd.f32 %v457, %v1462
  %v1464 = vpop.f32.mrb[0].mxu0
  %1465 = vmatprep.mubr.f32.mxu0 0.0
  %1466 = vmatmul.mubr.f32.gmra.mrb[0].mxu0 %v76
  %v1467 = vpop.f32.mrb[0].mxu0
  %v1468 = vadd.f32 %v459, %v1467
  %v1469 = vpop.f32.mrb[0].mxu0
  %1470 = vmatprep.mubr.f32.mxu0 0.0
  %1471 = vmatmul.mubr.f32.gmra.mrb[0].mxu0 %v77
  %v1472 = vpop.f32.mrb[0].mxu0
  %v1473 = vadd.f32 %v461, %v1472
  %v1474 = vpop.f32.mrb[0].mxu0
  %1475 = vmatprep.mubr.f32.mxu0 0.0
  %1476 = vmatmul.mubr.f32.gmra.mrb[0].mxu0 %v78
  %v1477 = vpop.f32.mrb[0].mxu0
  %v1478 = vadd.f32 %v463, %v1477
  %v1479 = vpop.f32.mrb[0].mxu0
  %1480 = vmatprep.mubr.f32.mxu0 0.0
  %1481 = vmatmul.mubr.f32.gmra.mrb[0].mxu0 %v79
  %v1482 = vpop.f32.mrb[0].mxu0
  %v1483 = vadd.f32 %v465, %v1482
  %v1484 = vpop.f32.mrb[0].mxu0
  %1485 = vmatprep.mubr.f32.mxu0 0.0
  %1486 = vmatmul.mubr.f32.gmra.mrb[0].mxu0 %v80
  %v1487 = vpop.f32.mrb[0].mxu0
  %v1488 = vadd.f32 %v467, %v1487
  %v1489 = vpop.f32.mrb[0].mxu0
  %1490 = vdwg.mxu0
  %v1491 = vsub.f32 0.0, %v1413
  %v1492 = vsub.f32 0.0, %v1418
  %v1493 = vsub.f32 0.0, %v1423
  %v1494 = vsub.f32 0.0, %v1428
  %v1495 = vsub.f32 0.0, %v1433
  %v1496 = vsub.f32 0.0, %v1438
  %v1497 = vsub.f32 0.0, %v1443
  %v1498 = vsub.f32 0.0, %v1448
  %v1499 = vsub.f32 0.0, %v1453
  %v1500 = vsub.f32 0.0, %v1458
  %v1501 = vsub.f32 0.0, %v1463
  %v1502 = vsub.f32 0.0, %v1468
  %v1503 = vsub.f32 0.0, %v1473
  %v1504 = vsub.f32 0.0, %v1478
  %v1505 = vsub.f32 0.0, %v1483
  %v1506 = vsub.f32 0.0, %v1488
  %v1507 = vmul.f32 %v1491, 1.442695
  %v1508 = vpow.pop %v1507
  %v1509 = vmul.f32 %v1492, 1.442695
  %v1510 = vpow.pop %v1509
  %v1511 = vmul.f32 %v1493, 1.442695
  %v1512 = vpow.pop %v1511
  %v1513 = vmul.f32 %v1494, 1.442695
  %v1514 = vpow.pop %v1513
  %v1515 = vmul.f32 %v1495, 1.442695
  %v1516 = vpow.pop %v1515
  %v1517 = vmul.f32 %v1496, 1.442695
  %v1518 = vpow.pop %v1517
  %v1519 = vmul.f32 %v1497, 1.442695
  %v1520 = vpow.pop %v1519
  %v1521 = vmul.f32 %v1498, 1.442695
  %v1522 = vpow.pop %v1521
  %v1523 = vmul.f32 %v1499, 1.442695
  %v1524 = vpow.pop %v1523
  %v1525 = vmul.f32 %v1500, 1.442695
  %v1526 = vpow.pop %v1525
  %v1527 = vmul.f32 %v1501, 1.442695
  %v1528 = vpow.pop %v1527
  %v1529 = vmul.f32 %v1502, 1.442695
  %v1530 = vpow.pop %v1529
  %v1531 = vmul.f32 %v1503, 1.442695
  %v1532 = vpow.pop %v1531
  %v1533 = vmul.f32 %v1504, 1.442695
  %v1534 = vpow.pop %v1533
  %v1535 = vmul.f32 %v1505, 1.442695
  %v1536 = vpow.pop %v1535
  %v1537 = vmul.f32 %v1506, 1.442695
  %v1538 = vpow.pop %v1537
  %v1539 = vadd.f32 %v1508, 1.0
  %v1540 = vadd.f32 %v1510, 1.0
  %v1541 = vadd.f32 %v1512, 1.0
  %v1542 = vadd.f32 %v1514, 1.0
  %v1543 = vadd.f32 %v1516, 1.0
  %v1544 = vadd.f32 %v1518, 1.0
  %v1545 = vadd.f32 %v1520, 1.0
  %v1546 = vadd.f32 %v1522, 1.0
  %v1547 = vadd.f32 %v1524, 1.0
  %v1548 = vadd.f32 %v1526, 1.0
  %v1549 = vadd.f32 %v1528, 1.0
  %v1550 = vadd.f32 %v1530, 1.0
  %v1551 = vadd.f32 %v1532, 1.0
  %v1552 = vadd.f32 %v1534, 1.0
  %v1553 = vadd.f32 %v1536, 1.0
  %v1554 = vadd.f32 %v1538, 1.0
  %v1555 = vrcp.pop %v1539
  %v1556 = vmul.f32 1.0, %v1555
  %v1557 = vrcp.pop %v1540
  %v1558 = vmul.f32 1.0, %v1557
  %v1559 = vrcp.pop %v1541
  %v1560 = vmul.f32 1.0, %v1559
  %v1561 = vrcp.pop %v1542
  %v1562 = vmul.f32 1.0, %v1561
  %v1563 = vrcp.pop %v1543
  %v1564 = vmul.f32 1.0, %v1563
  %v1565 = vrcp.pop %v1544
  %v1566 = vmul.f32 1.0, %v1565
  %v1567 = vrcp.pop %v1545
  %v1568 = vmul.f32 1.0, %v1567
  %v1569 = vrcp.pop %v1546
  %v1570 = vmul.f32 1.0, %v1569
  %v1571 = vrcp.pop %v1547
  %v1572 = vmul.f32 1.0, %v1571
  %v1573 = vrcp.pop %v1548
  %v1574 = vmul.f32 1.0, %v1573
  %v1575 = vrcp.pop %v1549
  %v1576 = vmul.f32 1.0, %v1575
  %v1577 = vrcp.pop %v1550
  %v1578 = vmul.f32 1.0, %v1577
  %v1579 = vrcp.pop %v1551
  %v1580 = vmul.f32 1.0, %v1579
  %v1581 = vrcp.pop %v1552
  %v1582 = vmul.f32 1.0, %v1581
  %v1583 = vrcp.pop %v1553
  %v1584 = vmul.f32 1.0, %v1583
  %v1585 = vrcp.pop %v1554
  %v1586 = vmul.f32 1.0, %v1585
  %1587 = vmatprep.subr.mxu0 %v1010
  %1588 = vmatpush1.msra.mxu0 %v1009
  %1589 = vmatprep.subr.mxu0 %v1012
  %1590 = vmatpush1.msra.mxu0 %v1011
  %1591 = vmatprep.subr.mxu0 %v1014
  %1592 = vmatpush1.msra.mxu0 %v1013
  %1593 = vmatprep.subr.mxu0 %v1016
  %1594 = vmatpush1.msra.mxu0 %v1015
  %1595 = vmatprep.subr.mxu0 %v1018
  %1596 = vmatpush1.msra.mxu0 %v1017
  %1597 = vmatprep.subr.mxu0 %v1020
  %1598 = vmatpush1.msra.mxu0 %v1019
  %1599 = vmatprep.subr.mxu0 %v1022
  %1600 = vmatpush1.msra.mxu0 %v1021
  %1601 = vmatprep.subr.mxu0 %v1024
  %1602 = vmatpush1.msra.mxu0 %v1023
  %1603 = vmatprep.subr.mxu0 %v1026
  %1604 = vmatpush1.msra.mxu0 %v1025
  %1605 = vmatprep.subr.mxu0 %v1028
  %1606 = vmatpush1.msra.mxu0 %v1027
  %1607 = vmatprep.subr.mxu0 %v1030
  %1608 = vmatpush1.msra.mxu0 %v1029
  %1609 = vmatprep.subr.mxu0 %v1032
  %1610 = vmatpush1.msra.mxu0 %v1031
  %1611 = vmatprep.subr.mxu0 %v1034
  %1612 = vmatpush1.msra.mxu0 %v1033
  %1613 = vmatprep.subr.mxu0 %v1036
  %1614 = vmatpush1.msra.mxu0 %v1035
  %1615 = vmatprep.subr.mxu0 %v1038
  %1616 = vmatpush1.msra.mxu0 %v1037
  %1617 = vmatprep.subr.mxu0 %v1040
  %1618 = vmatpush1.msra.mxu0 %v1039
  %1619 = vmatprep.subr.mxu0 0.0
  %1620 = vmatpush1.msra.mxu0 0.0
  %1621 = vmatprep.subr.mxu0 0.0
  %1622 = vmatpush1.msra.mxu0 0.0
  %1623 = vmatprep.subr.mxu0 0.0
  %1624 = vmatpush1.msra.mxu0 0.0
  %1625 = vmatprep.subr.mxu0 0.0
  %1626 = vmatpush1.msra.mxu0 0.0
  %1627 = vmatprep.subr.mxu0 0.0
  %1628 = vmatpush1.msra.mxu0 0.0
  %1629 = vmatprep.subr.mxu0 0.0
  %1630 = vmatpush1.msra.mxu0 0.0
  %1631 = vmatprep.subr.mxu0 0.0
  %1632 = vmatpush1.msra.mxu0 0.0
  %1633 = vmatprep.subr.mxu0 0.0
  %1634 = vmatpush1.msra.mxu0 0.0
  %1635 = vmatprep.subr.mxu0 0.0
  %1636 = vmatpush1.msra.mxu0 0.0
  %1637 = vmatprep.subr.mxu0 0.0
  %1638 = vmatpush1.msra.mxu0 0.0
  %1639 = vmatprep.subr.mxu0 0.0
  %1640 = vmatpush1.msra.mxu0 0.0
  %1641 = vmatprep.subr.mxu0 0.0
  %1642 = vmatpush1.msra.mxu0 0.0
  %1643 = vmatprep.subr.mxu0 0.0
  %1644 = vmatpush1.msra.mxu0 0.0
  %1645 = vmatprep.subr.mxu0 0.0
  %1646 = vmatpush1.msra.mxu0 0.0
  %1647 = vmatprep.subr.mxu0 0.0
  %1648 = vmatpush1.msra.mxu0 0.0
  %1649 = vmatprep.subr.mxu0 0.0
  %1650 = vmatpush1.msra.mxu0 0.0
  %1651 = vmatprep.mubr.f32.mxu0 0.0
  %1652 = vmatmul.mubr.f32.gmra.mrb[0].mxu0 %v81
  %v1653 = vpop.f32.mrb[0].mxu0
  %v1654 = vadd.f32 0.0, %v1653
  %v1655 = vpop.f32.mrb[0].mxu0
  %v1656 = vadd.f32 0.0, %v1655
  %1657 = vdwg.mxu0
  %v1658 = vsub.f32 0.0, %v1654
  %v1659 = vsub.f32 0.0, %v1656
  %v1660 = vmul.f32 %v1658, 1.442695
  %v1661 = vpow.pop %v1660
  %v1662 = vmul.f32 %v1659, 1.442695
  %v1663 = vpow.pop %v1662
  %v1664 = vadd.f32 %v1661, 1.0
  %v1665 = vadd.f32 %v1663, 1.0
  %v1666 = vrcp.pop %v1664
  %v1667 = vmul.f32 1.0, %v1666
  %v1668 = vrcp.pop %v1665
  %v1669 = vmul.f32 1.0, %v1668
  %v1670 = vadd.f32 %v1556, 1.0
  %v1671 = vadd.f32 %v1558, 1.0
  %v1672 = vadd.f32 %v1560, 1.0
  %v1673 = vadd.f32 %v1562, 1.0
  %v1674 = vadd.f32 %v1564, 1.0
  %v1675 = vadd.f32 %v1566, 1.0
  %v1676 = vadd.f32 %v1568, 1.0
  %v1677 = vadd.f32 %v1570, 1.0
  %v1678 = vadd.f32 %v1572, 1.0
  %v1679 = vadd.f32 %v1574, 1.0
  %v1680 = vadd.f32 %v1576, 1.0
  %v1681 = vadd.f32 %v1578, 1.0
  %v1682 = vadd.f32 %v1580, 1.0
  %v1683 = vadd.f32 %v1582, 1.0
  %v1684 = vadd.f32 %v1584, 1.0
  %v1685 = vadd.f32 %v1586, 1.0
  %1687 = vset.pattern.permute.xlu0 0
  %1688 = vperm.xlu0 %1687, %v1670
  %v1689 = vpop.permute.xlu0 %1688
  %1692 = vset.pattern.permute.xlu0 0
  %1693 = vperm.xlu0 %1692, %v1671
  %v1694 = vpop.permute.xlu0 %1693
  %1697 = vset.pattern.permute.xlu0 0
  %1698 = vperm.xlu0 %1697, %v1672
  %v1699 = vpop.permute.xlu0 %1698
  %1702 = vset.pattern.permute.xlu0 0
  %1703 = vperm.xlu0 %1702, %v1673
  %v1704 = vpop.permute.xlu0 %1703
  %1707 = vset.pattern.permute.xlu0 0
  %1708 = vperm.xlu0 %1707, %v1674
  %v1709 = vpop.permute.xlu0 %1708
  %1712 = vset.pattern.permute.xlu0 0
  %1713 = vperm.xlu0 %1712, %v1675
  %v1714 = vpop.permute.xlu0 %1713
  %1717 = vset.pattern.permute.xlu0 0
  %1718 = vperm.xlu0 %1717, %v1676
  %v1719 = vpop.permute.xlu0 %1718
  %1722 = vset.pattern.permute.xlu0 0
  %1723 = vperm.xlu0 %1722, %v1677
  %v1724 = vpop.permute.xlu0 %1723
  %1727 = vset.pattern.permute.xlu0 0
  %1728 = vperm.xlu0 %1727, %v1678
  %v1729 = vpop.permute.xlu0 %1728
  %1732 = vset.pattern.permute.xlu0 0
  %1733 = vperm.xlu0 %1732, %v1679
  %v1734 = vpop.permute.xlu0 %1733
  %1737 = vset.pattern.permute.xlu0 0
  %1738 = vperm.xlu0 %1737, %v1680
  %v1739 = vpop.permute.xlu0 %1738
  %1742 = vset.pattern.permute.xlu0 0
  %1743 = vperm.xlu0 %1742, %v1681
  %v1744 = vpop.permute.xlu0 %1743
  %1747 = vset.pattern.permute.xlu0 0
  %1748 = vperm.xlu0 %1747, %v1682
  %v1749 = vpop.permute.xlu0 %1748
  %1752 = vset.pattern.permute.xlu0 0
  %1753 = vperm.xlu0 %1752, %v1683
  %v1754 = vpop.permute.xlu0 %1753
  %1757 = vset.pattern.permute.xlu0 0
  %1758 = vperm.xlu0 %1757, %v1684
  %v1759 = vpop.permute.xlu0 %1758
  %1762 = vset.pattern.permute.xlu0 0
  %1763 = vperm.xlu0 %1762, %v1685
  %v1764 = vpop.permute.xlu0 %1763
  %v1766 = vlaneseq
  %v1767 = vshrl.u32 %v1766, 7
  %v1768 = vsub.s32 0, %v1767
  %v1769 = vrot.slane %v1667, %v1768
  %v1770 = vlaneseq
  %v1771 = vshrl.u32 %v1770, 7
  %v1772 = vsub.s32 0, %v1771
  %v1773 = vrot.slane %v1669, %v1772
  %v1774 = vadd.f32 %v1689, %v1769
  %v1775 = vadd.f32 %v1689, %v1773
  %v1776 = vadd.f32 %v1694, %v1769
  %v1777 = vadd.f32 %v1694, %v1773
  %v1778 = vadd.f32 %v1699, %v1769
  %v1779 = vadd.f32 %v1699, %v1773
  %v1780 = vadd.f32 %v1704, %v1769
  %v1781 = vadd.f32 %v1704, %v1773
  %v1782 = vadd.f32 %v1709, %v1769
  %v1783 = vadd.f32 %v1709, %v1773
  %v1784 = vadd.f32 %v1714, %v1769
  %v1785 = vadd.f32 %v1714, %v1773
  %v1786 = vadd.f32 %v1719, %v1769
  %v1787 = vadd.f32 %v1719, %v1773
  %v1788 = vadd.f32 %v1724, %v1769
  %v1789 = vadd.f32 %v1724, %v1773
  %v1790 = vadd.f32 %v1729, %v1769
  %v1791 = vadd.f32 %v1729, %v1773
  %v1792 = vadd.f32 %v1734, %v1769
  %v1793 = vadd.f32 %v1734, %v1773
  %v1794 = vadd.f32 %v1739, %v1769
  %v1795 = vadd.f32 %v1739, %v1773
  %v1796 = vadd.f32 %v1744, %v1769
  %v1797 = vadd.f32 %v1744, %v1773
  %v1798 = vadd.f32 %v1749, %v1769
  %v1799 = vadd.f32 %v1749, %v1773
  %v1800 = vadd.f32 %v1754, %v1769
  %v1801 = vadd.f32 %v1754, %v1773
  %v1802 = vadd.f32 %v1759, %v1769
  %v1803 = vadd.f32 %v1759, %v1773
  %v1804 = vadd.f32 %v1764, %v1769
  %v1805 = vadd.f32 %v1764, %v1773
  %v1806 = vmul.f32 %v1009, %v1774
  %v1807 = vmul.f32 %v1010, %v1775
  %v1808 = vmul.f32 %v1011, %v1776
  %v1809 = vmul.f32 %v1012, %v1777
  %v1810 = vmul.f32 %v1013, %v1778
  %v1811 = vmul.f32 %v1014, %v1779
  %v1812 = vmul.f32 %v1015, %v1780
  %v1813 = vmul.f32 %v1016, %v1781
  %v1814 = vmul.f32 %v1017, %v1782
  %v1815 = vmul.f32 %v1018, %v1783
  %v1816 = vmul.f32 %v1019, %v1784
  %v1817 = vmul.f32 %v1020, %v1785
  %v1818 = vmul.f32 %v1021, %v1786
  %v1819 = vmul.f32 %v1022, %v1787
  %v1820 = vmul.f32 %v1023, %v1788
  %v1821 = vmul.f32 %v1024, %v1789
  %v1822 = vmul.f32 %v1025, %v1790
  %v1823 = vmul.f32 %v1026, %v1791
  %v1824 = vmul.f32 %v1027, %v1792
  %v1825 = vmul.f32 %v1028, %v1793
  %v1826 = vmul.f32 %v1029, %v1794
  %v1827 = vmul.f32 %v1030, %v1795
  %v1828 = vmul.f32 %v1031, %v1796
  %v1829 = vmul.f32 %v1032, %v1797
  %v1830 = vmul.f32 %v1033, %v1798
  %v1831 = vmul.f32 %v1034, %v1799
  %v1832 = vmul.f32 %v1035, %v1800
  %v1833 = vmul.f32 %v1036, %v1801
  %v1834 = vmul.f32 %v1037, %v1802
  %v1835 = vmul.f32 %v1038, %v1803
  %v1836 = vmul.f32 %v1039, %v1804
  %v1837 = vmul.f32 %v1040, %v1805
  %s1838 = scalar_lea.vmem %s4, 256
  %1839 = vst [vmem:[%s1838] sm:$0xff] %v1806
  %1840 = vst [vmem:[%s1838 + $0x8] sm:$0xff] %v1807
  %1841 = vst [vmem:[%s1838 + $0x10] sm:$0xff] %v1808
  %1842 = vst [vmem:[%s1838 + $0x18] sm:$0xff] %v1809
  %1843 = vst [vmem:[%s1838 + $0x20] sm:$0xff] %v1810
  %1844 = vst [vmem:[%s1838 + $0x28] sm:$0xff] %v1811
  %1845 = vst [vmem:[%s1838 + $0x30] sm:$0xff] %v1812
  %1846 = vst [vmem:[%s1838 + $0x38] sm:$0xff] %v1813
  %1847 = vst [vmem:[%s1838 + $0x40] sm:$0xff] %v1814
  %1848 = vst [vmem:[%s1838 + $0x48] sm:$0xff] %v1815
  %1849 = vst [vmem:[%s1838 + $0x50] sm:$0xff] %v1816
  %1850 = vst [vmem:[%s1838 + $0x58] sm:$0xff] %v1817
  %1851 = vst [vmem:[%s1838 + $0x60] sm:$0xff] %v1818
  %1852 = vst [vmem:[%s1838 + $0x68] sm:$0xff] %v1819
  %1853 = vst [vmem:[%s1838 + $0x70] sm:$0xff] %v1820
  %1854 = vst [vmem:[%s1838 + $0x78] sm:$0xff] %v1821
  %1855 = vst [vmem:[%s1838 + $0x80] sm:$0xff] %v1822
  %1856 = vst [vmem:[%s1838 + $0x88] sm:$0xff] %v1823
  %1857 = vst [vmem:[%s1838 + $0x90] sm:$0xff] %v1824
  %1858 = vst [vmem:[%s1838 + $0x98] sm:$0xff] %v1825
  %1859 = vst [vmem:[%s1838 + $0xa0] sm:$0xff] %v1826
  %1860 = vst [vmem:[%s1838 + $0xa8] sm:$0xff] %v1827
  %1861 = vst [vmem:[%s1838 + $0xb0] sm:$0xff] %v1828
  %1862 = vst [vmem:[%s1838 + $0xb8] sm:$0xff] %v1829
  %1863 = vst [vmem:[%s1838 + $0xc0] sm:$0xff] %v1830
  %1864 = vst [vmem:[%s1838 + $0xc8] sm:$0xff] %v1831
  %1865 = vst [vmem:[%s1838 + $0xd0] sm:$0xff] %v1832
  %1866 = vst [vmem:[%s1838 + $0xd8] sm:$0xff] %v1833
  %1867 = vst [vmem:[%s1838 + $0xe0] sm:$0xff] %v1834
  %1868 = vst [vmem:[%s1838 + $0xe8] sm:$0xff] %v1835
  %1869 = vst [vmem:[%s1838 + $0xf0] sm:$0xff] %v1836
  %1870 = vst [vmem:[%s1838 + $0xf8] sm:$0xff] %v1837
  // Predicated region
  $region18: #{attention_forward.1} parent=0 // pred_check
    _
  $region19: #{attention_forward.1} parent=0 // pred_check_branch
    %1872 = sbr.rel (0) target = $region21
  $region20: #{attention_forward.1} parent=0 // pred_region
    _
  $region21: #{attention_forward.1} parent=0 // pred_fallthru
    _
  // Predicated region
  $region22: #{attention_forward.1} parent=0 // pred_check
    _
  $region23: #{attention_forward.1} parent=0 // pred_check_branch
    %1874 = sbr.rel (0) target = $region25
  $region24: #{attention_forward.1} parent=0 // pred_region
    _
  $region25: #{attention_forward.1} parent=0 // pred_fallthru
    _

</llo_original>
